<compile_context>
chip_gen: v6e
topology: v6e:2x2x1
jax: 0.10.0
libtpu: 0.0.40
codegen_flags: <defaults>
</compile_context>

<pallas_src>
import jax
import jax.numpy as jnp
from jax import lax
from jax.experimental import pallas as pl
from jax.experimental.pallas import tpu as pltpu

# ----------------------------- configuration ------------------------------
BATCH = 2
SEQ = 8
INPUT_SIZE = 4
HIDDEN = 32
NUM_LAYERS = 2


# ------------------------------ Pallas kernel -----------------------------
def make_wavefront_lstm_kernel(num_layers: int, seq_len: int, batch: int,
                               hidden: int):
    """Kernel ref layout:
       [x2d, h0, w_ih0_s, w_big, b_big, w_lin, b_lin] -> [out, h_n]."""
    L, T, B, H = num_layers, seq_len, batch, hidden
    f32 = jnp.float32

    def kernel(x_ref, h0_ref, wih0_ref, wbig_ref, bbig_ref, wlin_ref, blin_ref,
               out_ref, hn_ref):
        # ---- hoisted layer-0 input projection: one MXU pass for all T steps,
        # completely off the recurrent dependency chain. Kept as vreg values
        # (no scratch); slices have static offsets (T fully unrolled) and only
        # depend on xg_all, so they never sit on the recurrence chain.
        xg_all = jnp.dot(x_ref[...], wih0_ref[...],
                         preferred_element_type=f32)              # (T*B, 4H)
        xg = [xg_all[t * B:(t + 1) * B, :] for t in range(T)]      # T x (B, 4H)

        w_big = wbig_ref[...]     # (L*H, L*4H) block matrix (see prepare_params)
        b_big = bbig_ref[...]     # (1, L*4H)   fused b_ih+b_hh, sigmoid-scaled

        # g-gate lane mask (tanh); other gate lanes use sigmoid-via-tanh.
        # Hoisted: JAX does not CSE broadcasts.
        lane = lax.broadcasted_iota(jnp.int32, (B, 4 * H), 1)
        is_g = (lane >= 2 * H) & (lane < 3 * H)

        h = [h0_ref[l] for l in range(L)]     # (B, H); module reuses h0 as c0
        c = [h0_ref[l] for l in range(L)]

        # ---- wavefront: wave w runs timestep t = w - l of layer l. Every
        # active layer only reads state produced in wave w-1, so one fused
        # matmul per wave covers every layer's input+recurrent gate
        # contribution and the per-layer chains overlap.
        for w in range(T + L - 1):
            state = h[0] if L == 1 else jnp.concatenate(h, axis=-1)  # (B, L*H)
            mm = jnp.dot(state, w_big, preferred_element_type=f32) + b_big

            for l in range(L):
                t = w - l
                if 0 <= t < T:                       # static (Python) gating
                    gates = mm[:, l * 4 * H:(l + 1) * 4 * H]   # vreg-aligned
                    if l == 0:
                        gates = gates + xg[t]
                    # single EUP push: sigmoid(x) = 0.5*tanh(x/2)+0.5; the
                    # i/f/o weight & bias columns were pre-scaled by 0.5.
                    tg = jnp.tanh(gates)
                    act = jnp.where(is_g, tg, 0.5 * tg + 0.5)
                    i_g = act[:, 0 * H:1 * H]        # lane-aligned, free
                    f_g = act[:, 1 * H:2 * H]        # XLU lane shift
                    g_g = act[:, 2 * H:3 * H]
                    o_g = act[:, 3 * H:4 * H]
                    c[l] = f_g * c[l] + i_g * g_g
                    h[l] = o_g * jnp.tanh(c[l])

        for l in range(L):
            hn_ref[l] = h[l]
        # Linear head (H -> 1): broadcast-mul + lane reduce, no MXU pass.
        out_ref[...] = (jnp.sum(h[L - 1] * wlin_ref[...], axis=-1, keepdims=True)
                        + blin_ref[...])

    return kernel


# ------------------------------ wrapper -----------------------------------
def prepare_params(lstm_params, lin_w, lin_b):
    """One-time parameter preprocessing kept off the jitted inference path:
    transposes, b_ih+b_hh fusion, 0.5 pre-scale of i/f/o gate columns
    (sigmoid-via-tanh), and the fused block weight
        W_big = [[W_hh^0, W_ih^1,      0, ...],
                 [     0, W_hh^1, W_ih^2, ...], ...]   (L*H, L*4H)."""
    L = len(lstm_params)
    H = lstm_params[0][1].shape[1]                     # w_hh: (4H, H)
    scale = jnp.concatenate([jnp.full((H,), 0.5, jnp.float32),   # i
                             jnp.full((H,), 0.5, jnp.float32),   # f
                             jnp.ones((H,), jnp.float32),        # g (tanh)
                             jnp.full((H,), 0.5, jnp.float32)])  # o

    w_ih0_s = jnp.asarray(lstm_params[0][0]).T * scale[None, :]  # (I, 4H)

    w_big = jnp.zeros((L * H, L * 4 * H), jnp.float32)
    b_big = jnp.zeros((1, L * 4 * H), jnp.float32)
    for l, (w_ih, w_hh, b_ih, b_hh) in enumerate(lstm_params):
        cols = slice(l * 4 * H, (l + 1) * 4 * H)
        w_big = w_big.at[l * H:(l + 1) * H, cols].set(
            jnp.asarray(w_hh).T * scale[None, :])
        if l > 0:
            w_big = w_big.at[(l - 1) * H:l * H, cols].set(
                jnp.asarray(w_ih).T * scale[None, :])
        b_big = b_big.at[0, cols].set((b_ih + b_hh) * scale)

    return (w_ih0_s, w_big, b_big,
            jnp.asarray(lin_w).reshape(1, -1),
            jnp.asarray(lin_b).reshape(1, 1))


@jax.jit
def net_forward(x, hidden_prev, *prepared):
    """x: (B, T, I) batch_first (PyTorch convention); hidden_prev: (L, B, H)."""
    B, T, I = x.shape
    L, _, H = hidden_prev.shape

    # time-major, flattened rows: row t*B + b  <->  (t, b)
    x_2d = jnp.transpose(x, (1, 0, 2)).reshape(T * B, I)

    kernel = make_wavefront_lstm_kernel(L, T, B, H)
    n_in = 2 + len(prepared)

    out, h_n = pl.pallas_call(
        kernel,
        out_shape=(
            jax.ShapeDtypeStruct((B, 1), jnp.float32),       # linear output
            jax.ShapeDtypeStruct((L, B, H), jnp.float32),    # final hidden
        ),
        in_specs=[pl.BlockSpec(memory_space=pltpu.MemorySpace.VMEM)] * n_in,
        out_specs=(
            pl.BlockSpec(memory_space=pltpu.MemorySpace.VMEM),
            pl.BlockSpec(memory_space=pltpu.MemorySpace.VMEM),
        ),
    )(x_2d, hidden_prev, *prepared)
    return out, h_n


# --------------------------- pure-JAX reference ----------------------------
def reference(x, h0, lstm_params, lin_w, lin_b):
    B, T, I = x.shape
    L, _, H = h0.shape
    layer_in = x
    h_fin = []
    for l in range(L):
        w_ih, w_hh, b_ih, b_hh = lstm_params[l]
        hl, cl = h0[l], h0[l]
        outs = []
        for t in range(T):
            xt = layer_in[:, t, :]
            gates = xt @ w_ih.T + hl @ w_hh.T + b_ih + b_hh
            i = jax.nn.sigmoid(gates[:, :H])
            f = jax.nn.sigmoid(gates[:, H:2 * H])
            g = jnp.tanh(gates[:, 2 * H:3 * H])
            o = jax.nn.sigmoid(gates[:, 3 * H:])
            cl = f * cl + i * g
            hl = o * jnp.tanh(cl)
            outs.append(hl)
        layer_in = jnp.stack(outs, axis=1)
        h_fin.append(hl)
    out = layer_in[:, -1, :] @ lin_w.T + lin_b
    return out, jnp.stack(h_fin, axis=0)


# ------------------------------- main --------------------------------------
if __name__ == "__main__":
    key = jax.random.PRNGKey(0)

    # Deterministic parameter init mirroring the module:
    # LSTM params ~ N(0, 0.001); Linear: small uniform.
    lstm_params = []
    for l in range(NUM_LAYERS):
        in_dim = INPUT_SIZE if l == 0 else HIDDEN
        key, k1, k2, k3, k4 = jax.random.split(key, 5)
        w_ih = 0.001 * jax.random.normal(k1, (4 * HIDDEN, in_dim), jnp.float32)
        w_hh = 0.001 * jax.random.normal(k2, (4 * HIDDEN, HIDDEN), jnp.float32)
        b_ih = 0.001 * jax.random.normal(k3, (4 * HIDDEN,), jnp.float32)
        b_hh = 0.001 * jax.random.normal(k4, (4 * HIDDEN,), jnp.float32)
        lstm_params.append((w_ih, w_hh, b_ih, b_hh))

    key, k5, k6, kx, kh = jax.random.split(key, 5)
    bound = 1.0 / jnp.sqrt(HIDDEN)
    lin_w = jax.random.uniform(k5, (1, HIDDEN), jnp.float32, -bound, bound)
    lin_b = jax.random.uniform(k6, (1,), jnp.float32, -bound, bound)

    x = jax.random.normal(kx, (BATCH, SEQ, INPUT_SIZE), jnp.float32)
    hidden_prev = jax.random.normal(kh, (NUM_LAYERS, BATCH, HIDDEN), jnp.float32)

    # One-time parameter preprocessing (off the hot path).
    prepared = prepare_params(lstm_params, lin_w, lin_b)

    out, h_n = net_forward(x, hidden_prev, *prepared)
    out = jax.block_until_ready(out)
    h_n = jax.block_until_ready(h_n)

    ref_out, ref_hn = reference(x, hidden_prev, lstm_params, lin_w, lin_b)
    assert out.shape == (BATCH, 1) and h_n.shape == (NUM_LAYERS, BATCH, HIDDEN)
    assert jnp.allclose(out, ref_out, atol=1e-5), "output mismatch vs reference"
    assert jnp.allclose(h_n, ref_hn, atol=1e-5), "hidden mismatch vs reference"

    print("KERNEL_OK")
</pallas_src>

<mosaic_0001>
module attributes {stable_mosaic.version = 11 : i64} {
  func.func @kernel(%arg0: memref<16x4xf32, #tpu.memory_space<vmem>>, %arg1: memref<2x2x32xf32, #tpu.memory_space<vmem>>, %arg2: memref<4x128xf32, #tpu.memory_space<vmem>>, %arg3: memref<64x256xf32, #tpu.memory_space<vmem>>, %arg4: memref<1x256xf32, #tpu.memory_space<vmem>>, %arg5: memref<1x32xf32, #tpu.memory_space<vmem>>, %arg6: memref<1x1xf32, #tpu.memory_space<vmem>>, %arg7: memref<2x1xf32, #tpu.memory_space<vmem>>, %arg8: memref<2x2x32xf32, #tpu.memory_space<vmem>>) attributes {dimension_semantics = [], scalar_prefetch = 0 : i64, scratch_operands = 0 : i64, tpu.core_type = #tpu.core_type<tc>} {
    %c0 = arith.constant 0 : index
    %c0_0 = arith.constant 0 : index
    %0 = vector.load %arg0[%c0, %c0_0] : memref<16x4xf32, #tpu.memory_space<vmem>>, vector<16x4xf32>
    %c0_1 = arith.constant 0 : index
    %c0_2 = arith.constant 0 : index
    %1 = vector.load %arg2[%c0_1, %c0_2] : memref<4x128xf32, #tpu.memory_space<vmem>>, vector<4x128xf32>
    %cst = arith.constant dense<0.000000e+00> : vector<16x128xf32>
    %2 = tpu.matmul %0, %1, %cst {dimension_numbers = #tpu.dot_dimension_numbers<[1], [0], [0], [1], [0, 0, 1, 1], [], []>} : vector<16x4xf32>, vector<4x128xf32>, vector<16x128xf32> -> vector<16x128xf32>
    %3 = vector.extract_strided_slice %2 {offsets = [0, 0], sizes = [2, 128], strides = [1, 1]} : vector<16x128xf32> to vector<2x128xf32>
    %4 = vector.extract_strided_slice %2 {offsets = [2, 0], sizes = [2, 128], strides = [1, 1]} : vector<16x128xf32> to vector<2x128xf32>
    %5 = vector.extract_strided_slice %2 {offsets = [4, 0], sizes = [2, 128], strides = [1, 1]} : vector<16x128xf32> to vector<2x128xf32>
    %6 = vector.extract_strided_slice %2 {offsets = [6, 0], sizes = [2, 128], strides = [1, 1]} : vector<16x128xf32> to vector<2x128xf32>
    %7 = vector.extract_strided_slice %2 {offsets = [8, 0], sizes = [2, 128], strides = [1, 1]} : vector<16x128xf32> to vector<2x128xf32>
    %8 = vector.extract_strided_slice %2 {offsets = [10, 0], sizes = [2, 128], strides = [1, 1]} : vector<16x128xf32> to vector<2x128xf32>
    %9 = vector.extract_strided_slice %2 {offsets = [12, 0], sizes = [2, 128], strides = [1, 1]} : vector<16x128xf32> to vector<2x128xf32>
    %10 = vector.extract_strided_slice %2 {offsets = [14, 0], sizes = [2, 128], strides = [1, 1]} : vector<16x128xf32> to vector<2x128xf32>
    %c0_3 = arith.constant 0 : index
    %c0_4 = arith.constant 0 : index
    %11 = vector.load %arg3[%c0_3, %c0_4] : memref<64x256xf32, #tpu.memory_space<vmem>>, vector<64x256xf32>
    %c0_5 = arith.constant 0 : index
    %c0_6 = arith.constant 0 : index
    %12 = vector.load %arg4[%c0_5, %c0_6] : memref<1x256xf32, #tpu.memory_space<vmem>>, vector<1x256xf32>
    %13 = tpu.iota {dimensions = array<i32: 1>} : vector<2x128xi32>
    %c64_i32 = arith.constant 64 : i32
    %14 = vector.broadcast %c64_i32 : i32 to vector<2x128xi32>
    %15 = arith.cmpi sge, %13, %14 : vector<2x128xi32>
    %c96_i32 = arith.constant 96 : i32
    %16 = vector.broadcast %c96_i32 : i32 to vector<2x128xi32>
    %17 = arith.cmpi slt, %13, %16 : vector<2x128xi32>
    %18 = arith.andi %15, %17 : vector<2x128xi1>
    %c0_7 = arith.constant 0 : index
    %c0_8 = arith.constant 0 : index
    %c0_9 = arith.constant 0 : index
    %19 = vector.load %arg1[%c0_7, %c0_8, %c0_9] : memref<2x2x32xf32, #tpu.memory_space<vmem>>, vector<1x2x32xf32>
    %20 = vector.shape_cast %19 : vector<1x2x32xf32> to vector<2x32xf32>
    %c1 = arith.constant 1 : index
    %c0_10 = arith.constant 0 : index
    %c0_11 = arith.constant 0 : index
    %21 = vector.load %arg1[%c1, %c0_10, %c0_11] : memref<2x2x32xf32, #tpu.memory_space<vmem>>, vector<1x2x32xf32>
    %22 = vector.shape_cast %21 : vector<1x2x32xf32> to vector<2x32xf32>
    %c0_12 = arith.constant 0 : index
    %c0_13 = arith.constant 0 : index
    %c0_14 = arith.constant 0 : index
    %23 = vector.load %arg1[%c0_12, %c0_13, %c0_14] : memref<2x2x32xf32, #tpu.memory_space<vmem>>, vector<1x2x32xf32>
    %24 = vector.shape_cast %23 : vector<1x2x32xf32> to vector<2x32xf32>
    %c1_15 = arith.constant 1 : index
    %c0_16 = arith.constant 0 : index
    %c0_17 = arith.constant 0 : index
    %25 = vector.load %arg1[%c1_15, %c0_16, %c0_17] : memref<2x2x32xf32, #tpu.memory_space<vmem>>, vector<1x2x32xf32>
    %26 = vector.shape_cast %25 : vector<1x2x32xf32> to vector<2x32xf32>
    %27 = tpu.concatenate %20, %22 in 1 : vector<2x32xf32>, vector<2x32xf32> -> vector<2x64xf32>
    %cst_18 = arith.constant dense<0.000000e+00> : vector<2x256xf32>
    %28 = tpu.matmul %27, %11, %cst_18 {dimension_numbers = #tpu.dot_dimension_numbers<[1], [0], [0], [1], [0, 0, 1, 1], [], []>} : vector<2x64xf32>, vector<64x256xf32>, vector<2x256xf32> -> vector<2x256xf32>
    %29 = vector.broadcast %12 : vector<1x256xf32> to vector<2x256xf32>
    %30 = arith.addf %28, %29 : vector<2x256xf32>
    %31 = vector.extract_strided_slice %30 {offsets = [0, 0], sizes = [2, 128], strides = [1, 1]} : vector<2x256xf32> to vector<2x128xf32>
    %32 = arith.addf %31, %3 : vector<2x128xf32>
    %33 = math.tanh %32 : vector<2x128xf32>
    %cst_19 = arith.constant 5.000000e-01 : f32
    %34 = vector.broadcast %cst_19 : f32 to vector<2x128xf32>
    %35 = arith.mulf %34, %33 : vector<2x128xf32>
    %cst_20 = arith.constant 5.000000e-01 : f32
    %36 = vector.broadcast %cst_20 : f32 to vector<2x128xf32>
    %37 = arith.addf %35, %36 : vector<2x128xf32>
    %38 = arith.select %18, %33, %37 : vector<2x128xi1>, vector<2x128xf32>
    %39 = vector.extract_strided_slice %38 {offsets = [0, 0], sizes = [2, 32], strides = [1, 1]} : vector<2x128xf32> to vector<2x32xf32>
    %40 = vector.extract_strided_slice %38 {offsets = [0, 32], sizes = [2, 32], strides = [1, 1]} : vector<2x128xf32> to vector<2x32xf32>
    %41 = vector.extract_strided_slice %38 {offsets = [0, 64], sizes = [2, 32], strides = [1, 1]} : vector<2x128xf32> to vector<2x32xf32>
    %42 = vector.extract_strided_slice %38 {offsets = [0, 96], sizes = [2, 32], strides = [1, 1]} : vector<2x128xf32> to vector<2x32xf32>
    %43 = arith.mulf %40, %24 : vector<2x32xf32>
    %44 = arith.mulf %39, %41 : vector<2x32xf32>
    %45 = arith.addf %43, %44 : vector<2x32xf32>
    %46 = math.tanh %45 : vector<2x32xf32>
    %47 = arith.mulf %42, %46 : vector<2x32xf32>
    %48 = tpu.concatenate %47, %22 in 1 : vector<2x32xf32>, vector<2x32xf32> -> vector<2x64xf32>
    %cst_21 = arith.constant dense<0.000000e+00> : vector<2x256xf32>
    %49 = tpu.matmul %48, %11, %cst_21 {dimension_numbers = #tpu.dot_dimension_numbers<[1], [0], [0], [1], [0, 0, 1, 1], [], []>} : vector<2x64xf32>, vector<64x256xf32>, vector<2x256xf32> -> vector<2x256xf32>
    %50 = vector.broadcast %12 : vector<1x256xf32> to vector<2x256xf32>
    %51 = arith.addf %49, %50 : vector<2x256xf32>
    %52 = vector.extract_strided_slice %51 {offsets = [0, 0], sizes = [2, 128], strides = [1, 1]} : vector<2x256xf32> to vector<2x128xf32>
    %53 = arith.addf %52, %4 : vector<2x128xf32>
    %54 = math.tanh %53 : vector<2x128xf32>
    %cst_22 = arith.constant 5.000000e-01 : f32
    %55 = vector.broadcast %cst_22 : f32 to vector<2x128xf32>
    %56 = arith.mulf %55, %54 : vector<2x128xf32>
    %cst_23 = arith.constant 5.000000e-01 : f32
    %57 = vector.broadcast %cst_23 : f32 to vector<2x128xf32>
    %58 = arith.addf %56, %57 : vector<2x128xf32>
    %59 = arith.select %18, %54, %58 : vector<2x128xi1>, vector<2x128xf32>
    %60 = vector.extract_strided_slice %59 {offsets = [0, 0], sizes = [2, 32], strides = [1, 1]} : vector<2x128xf32> to vector<2x32xf32>
    %61 = vector.extract_strided_slice %59 {offsets = [0, 32], sizes = [2, 32], strides = [1, 1]} : vector<2x128xf32> to vector<2x32xf32>
    %62 = vector.extract_strided_slice %59 {offsets = [0, 64], sizes = [2, 32], strides = [1, 1]} : vector<2x128xf32> to vector<2x32xf32>
    %63 = vector.extract_strided_slice %59 {offsets = [0, 96], sizes = [2, 32], strides = [1, 1]} : vector<2x128xf32> to vector<2x32xf32>
    %64 = arith.mulf %61, %45 : vector<2x32xf32>
    %65 = arith.mulf %60, %62 : vector<2x32xf32>
    %66 = arith.addf %64, %65 : vector<2x32xf32>
    %67 = math.tanh %66 : vector<2x32xf32>
    %68 = arith.mulf %63, %67 : vector<2x32xf32>
    %69 = vector.extract_strided_slice %51 {offsets = [0, 128], sizes = [2, 128], strides = [1, 1]} : vector<2x256xf32> to vector<2x128xf32>
    %70 = math.tanh %69 : vector<2x128xf32>
    %cst_24 = arith.constant 5.000000e-01 : f32
    %71 = vector.broadcast %cst_24 : f32 to vector<2x128xf32>
    %72 = arith.mulf %71, %70 : vector<2x128xf32>
    %cst_25 = arith.constant 5.000000e-01 : f32
    %73 = vector.broadcast %cst_25 : f32 to vector<2x128xf32>
    %74 = arith.addf %72, %73 : vector<2x128xf32>
    %75 = arith.select %18, %70, %74 : vector<2x128xi1>, vector<2x128xf32>
    %76 = vector.extract_strided_slice %75 {offsets = [0, 0], sizes = [2, 32], strides = [1, 1]} : vector<2x128xf32> to vector<2x32xf32>
    %77 = vector.extract_strided_slice %75 {offsets = [0, 32], sizes = [2, 32], strides = [1, 1]} : vector<2x128xf32> to vector<2x32xf32>
    %78 = vector.extract_strided_slice %75 {offsets = [0, 64], sizes = [2, 32], strides = [1, 1]} : vector<2x128xf32> to vector<2x32xf32>
    %79 = vector.extract_strided_slice %75 {offsets = [0, 96], sizes = [2, 32], strides = [1, 1]} : vector<2x128xf32> to vector<2x32xf32>
    %80 = arith.mulf %77, %26 : vector<2x32xf32>
    %81 = arith.mulf %76, %78 : vector<2x32xf32>
    %82 = arith.addf %80, %81 : vector<2x32xf32>
    %83 = math.tanh %82 : vector<2x32xf32>
    %84 = arith.mulf %79, %83 : vector<2x32xf32>
    %85 = tpu.concatenate %68, %84 in 1 : vector<2x32xf32>, vector<2x32xf32> -> vector<2x64xf32>
    %cst_26 = arith.constant dense<0.000000e+00> : vector<2x256xf32>
    %86 = tpu.matmul %85, %11, %cst_26 {dimension_numbers = #tpu.dot_dimension_numbers<[1], [0], [0], [1], [0, 0, 1, 1], [], []>} : vector<2x64xf32>, vector<64x256xf32>, vector<2x256xf32> -> vector<2x256xf32>
    %87 = vector.broadcast %12 : vector<1x256xf32> to vector<2x256xf32>
    %88 = arith.addf %86, %87 : vector<2x256xf32>
    %89 = vector.extract_strided_slice %88 {offsets = [0, 0], sizes = [2, 128], strides = [1, 1]} : vector<2x256xf32> to vector<2x128xf32>
    %90 = arith.addf %89, %5 : vector<2x128xf32>
    %91 = math.tanh %90 : vector<2x128xf32>
    %cst_27 = arith.constant 5.000000e-01 : f32
    %92 = vector.broadcast %cst_27 : f32 to vector<2x128xf32>
    %93 = arith.mulf %92, %91 : vector<2x128xf32>
    %cst_28 = arith.constant 5.000000e-01 : f32
    %94 = vector.broadcast %cst_28 : f32 to vector<2x128xf32>
    %95 = arith.addf %93, %94 : vector<2x128xf32>
    %96 = arith.select %18, %91, %95 : vector<2x128xi1>, vector<2x128xf32>
    %97 = vector.extract_strided_slice %96 {offsets = [0, 0], sizes = [2, 32], strides = [1, 1]} : vector<2x128xf32> to vector<2x32xf32>
    %98 = vector.extract_strided_slice %96 {offsets = [0, 32], sizes = [2, 32], strides = [1, 1]} : vector<2x128xf32> to vector<2x32xf32>
    %99 = vector.extract_strided_slice %96 {offsets = [0, 64], sizes = [2, 32], strides = [1, 1]} : vector<2x128xf32> to vector<2x32xf32>
    %100 = vector.extract_strided_slice %96 {offsets = [0, 96], sizes = [2, 32], strides = [1, 1]} : vector<2x128xf32> to vector<2x32xf32>
    %101 = arith.mulf %98, %66 : vector<2x32xf32>
    %102 = arith.mulf %97, %99 : vector<2x32xf32>
    %103 = arith.addf %101, %102 : vector<2x32xf32>
    %104 = math.tanh %103 : vector<2x32xf32>
    %105 = arith.mulf %100, %104 : vector<2x32xf32>
    %106 = vector.extract_strided_slice %88 {offsets = [0, 128], sizes = [2, 128], strides = [1, 1]} : vector<2x256xf32> to vector<2x128xf32>
    %107 = math.tanh %106 : vector<2x128xf32>
    %cst_29 = arith.constant 5.000000e-01 : f32
    %108 = vector.broadcast %cst_29 : f32 to vector<2x128xf32>
    %109 = arith.mulf %108, %107 : vector<2x128xf32>
    %cst_30 = arith.constant 5.000000e-01 : f32
    %110 = vector.broadcast %cst_30 : f32 to vector<2x128xf32>
    %111 = arith.addf %109, %110 : vector<2x128xf32>
    %112 = arith.select %18, %107, %111 : vector<2x128xi1>, vector<2x128xf32>
    %113 = vector.extract_strided_slice %112 {offsets = [0, 0], sizes = [2, 32], strides = [1, 1]} : vector<2x128xf32> to vector<2x32xf32>
    %114 = vector.extract_strided_slice %112 {offsets = [0, 32], sizes = [2, 32], strides = [1, 1]} : vector<2x128xf32> to vector<2x32xf32>
    %115 = vector.extract_strided_slice %112 {offsets = [0, 64], sizes = [2, 32], strides = [1, 1]} : vector<2x128xf32> to vector<2x32xf32>
    %116 = vector.extract_strided_slice %112 {offsets = [0, 96], sizes = [2, 32], strides = [1, 1]} : vector<2x128xf32> to vector<2x32xf32>
    %117 = arith.mulf %114, %82 : vector<2x32xf32>
    %118 = arith.mulf %113, %115 : vector<2x32xf32>
    %119 = arith.addf %117, %118 : vector<2x32xf32>
    %120 = math.tanh %119 : vector<2x32xf32>
    %121 = arith.mulf %116, %120 : vector<2x32xf32>
    %122 = tpu.concatenate %105, %121 in 1 : vector<2x32xf32>, vector<2x32xf32> -> vector<2x64xf32>
    %cst_31 = arith.constant dense<0.000000e+00> : vector<2x256xf32>
    %123 = tpu.matmul %122, %11, %cst_31 {dimension_numbers = #tpu.dot_dimension_numbers<[1], [0], [0], [1], [0, 0, 1, 1], [], []>} : vector<2x64xf32>, vector<64x256xf32>, vector<2x256xf32> -> vector<2x256xf32>
    %124 = vector.broadcast %12 : vector<1x256xf32> to vector<2x256xf32>
    %125 = arith.addf %123, %124 : vector<2x256xf32>
    %126 = vector.extract_strided_slice %125 {offsets = [0, 0], sizes = [2, 128], strides = [1, 1]} : vector<2x256xf32> to vector<2x128xf32>
    %127 = arith.addf %126, %6 : vector<2x128xf32>
    %128 = math.tanh %127 : vector<2x128xf32>
    %cst_32 = arith.constant 5.000000e-01 : f32
    %129 = vector.broadcast %cst_32 : f32 to vector<2x128xf32>
    %130 = arith.mulf %129, %128 : vector<2x128xf32>
    %cst_33 = arith.constant 5.000000e-01 : f32
    %131 = vector.broadcast %cst_33 : f32 to vector<2x128xf32>
    %132 = arith.addf %130, %131 : vector<2x128xf32>
    %133 = arith.select %18, %128, %132 : vector<2x128xi1>, vector<2x128xf32>
    %134 = vector.extract_strided_slice %133 {offsets = [0, 0], sizes = [2, 32], strides = [1, 1]} : vector<2x128xf32> to vector<2x32xf32>
    %135 = vector.extract_strided_slice %133 {offsets = [0, 32], sizes = [2, 32], strides = [1, 1]} : vector<2x128xf32> to vector<2x32xf32>
    %136 = vector.extract_strided_slice %133 {offsets = [0, 64], sizes = [2, 32], strides = [1, 1]} : vector<2x128xf32> to vector<2x32xf32>
    %137 = vector.extract_strided_slice %133 {offsets = [0, 96], sizes = [2, 32], strides = [1, 1]} : vector<2x128xf32> to vector<2x32xf32>
    %138 = arith.mulf %135, %103 : vector<2x32xf32>
    %139 = arith.mulf %134, %136 : vector<2x32xf32>
    %140 = arith.addf %138, %139 : vector<2x32xf32>
    %141 = math.tanh %140 : vector<2x32xf32>
    %142 = arith.mulf %137, %141 : vector<2x32xf32>
    %143 = vector.extract_strided_slice %125 {offsets = [0, 128], sizes = [2, 128], strides = [1, 1]} : vector<2x256xf32> to vector<2x128xf32>
    %144 = math.tanh %143 : vector<2x128xf32>
    %cst_34 = arith.constant 5.000000e-01 : f32
    %145 = vector.broadcast %cst_34 : f32 to vector<2x128xf32>
    %146 = arith.mulf %145, %144 : vector<2x128xf32>
    %cst_35 = arith.constant 5.000000e-01 : f32
    %147 = vector.broadcast %cst_35 : f32 to vector<2x128xf32>
    %148 = arith.addf %146, %147 : vector<2x128xf32>
    %149 = arith.select %18, %144, %148 : vector<2x128xi1>, vector<2x128xf32>
    %150 = vector.extract_strided_slice %149 {offsets = [0, 0], sizes = [2, 32], strides = [1, 1]} : vector<2x128xf32> to vector<2x32xf32>
    %151 = vector.extract_strided_slice %149 {offsets = [0, 32], sizes = [2, 32], strides = [1, 1]} : vector<2x128xf32> to vector<2x32xf32>
    %152 = vector.extract_strided_slice %149 {offsets = [0, 64], sizes = [2, 32], strides = [1, 1]} : vector<2x128xf32> to vector<2x32xf32>
    %153 = vector.extract_strided_slice %149 {offsets = [0, 96], sizes = [2, 32], strides = [1, 1]} : vector<2x128xf32> to vector<2x32xf32>
    %154 = arith.mulf %151, %119 : vector<2x32xf32>
    %155 = arith.mulf %150, %152 : vector<2x32xf32>
    %156 = arith.addf %154, %155 : vector<2x32xf32>
    %157 = math.tanh %156 : vector<2x32xf32>
    %158 = arith.mulf %153, %157 : vector<2x32xf32>
    %159 = tpu.concatenate %142, %158 in 1 : vector<2x32xf32>, vector<2x32xf32> -> vector<2x64xf32>
    %cst_36 = arith.constant dense<0.000000e+00> : vector<2x256xf32>
    %160 = tpu.matmul %159, %11, %cst_36 {dimension_numbers = #tpu.dot_dimension_numbers<[1], [0], [0], [1], [0, 0, 1, 1], [], []>} : vector<2x64xf32>, vector<64x256xf32>, vector<2x256xf32> -> vector<2x256xf32>
    %161 = vector.broadcast %12 : vector<1x256xf32> to vector<2x256xf32>
    %162 = arith.addf %160, %161 : vector<2x256xf32>
    %163 = vector.extract_strided_slice %162 {offsets = [0, 0], sizes = [2, 128], strides = [1, 1]} : vector<2x256xf32> to vector<2x128xf32>
    %164 = arith.addf %163, %7 : vector<2x128xf32>
    %165 = math.tanh %164 : vector<2x128xf32>
    %cst_37 = arith.constant 5.000000e-01 : f32
    %166 = vector.broadcast %cst_37 : f32 to vector<2x128xf32>
    %167 = arith.mulf %166, %165 : vector<2x128xf32>
    %cst_38 = arith.constant 5.000000e-01 : f32
    %168 = vector.broadcast %cst_38 : f32 to vector<2x128xf32>
    %169 = arith.addf %167, %168 : vector<2x128xf32>
    %170 = arith.select %18, %165, %169 : vector<2x128xi1>, vector<2x128xf32>
    %171 = vector.extract_strided_slice %170 {offsets = [0, 0], sizes = [2, 32], strides = [1, 1]} : vector<2x128xf32> to vector<2x32xf32>
    %172 = vector.extract_strided_slice %170 {offsets = [0, 32], sizes = [2, 32], strides = [1, 1]} : vector<2x128xf32> to vector<2x32xf32>
    %173 = vector.extract_strided_slice %170 {offsets = [0, 64], sizes = [2, 32], strides = [1, 1]} : vector<2x128xf32> to vector<2x32xf32>
    %174 = vector.extract_strided_slice %170 {offsets = [0, 96], sizes = [2, 32], strides = [1, 1]} : vector<2x128xf32> to vector<2x32xf32>
    %175 = arith.mulf %172, %140 : vector<2x32xf32>
    %176 = arith.mulf %171, %173 : vector<2x32xf32>
    %177 = arith.addf %175, %176 : vector<2x32xf32>
    %178 = math.tanh %177 : vector<2x32xf32>
    %179 = arith.mulf %174, %178 : vector<2x32xf32>
    %180 = vector.extract_strided_slice %162 {offsets = [0, 128], sizes = [2, 128], strides = [1, 1]} : vector<2x256xf32> to vector<2x128xf32>
    %181 = math.tanh %180 : vector<2x128xf32>
    %cst_39 = arith.constant 5.000000e-01 : f32
    %182 = vector.broadcast %cst_39 : f32 to vector<2x128xf32>
    %183 = arith.mulf %182, %181 : vector<2x128xf32>
    %cst_40 = arith.constant 5.000000e-01 : f32
    %184 = vector.broadcast %cst_40 : f32 to vector<2x128xf32>
    %185 = arith.addf %183, %184 : vector<2x128xf32>
    %186 = arith.select %18, %181, %185 : vector<2x128xi1>, vector<2x128xf32>
    %187 = vector.extract_strided_slice %186 {offsets = [0, 0], sizes = [2, 32], strides = [1, 1]} : vector<2x128xf32> to vector<2x32xf32>
    %188 = vector.extract_strided_slice %186 {offsets = [0, 32], sizes = [2, 32], strides = [1, 1]} : vector<2x128xf32> to vector<2x32xf32>
    %189 = vector.extract_strided_slice %186 {offsets = [0, 64], sizes = [2, 32], strides = [1, 1]} : vector<2x128xf32> to vector<2x32xf32>
    %190 = vector.extract_strided_slice %186 {offsets = [0, 96], sizes = [2, 32], strides = [1, 1]} : vector<2x128xf32> to vector<2x32xf32>
    %191 = arith.mulf %188, %156 : vector<2x32xf32>
    %192 = arith.mulf %187, %189 : vector<2x32xf32>
    %193 = arith.addf %191, %192 : vector<2x32xf32>
    %194 = math.tanh %193 : vector<2x32xf32>
    %195 = arith.mulf %190, %194 : vector<2x32xf32>
    %196 = tpu.concatenate %179, %195 in 1 : vector<2x32xf32>, vector<2x32xf32> -> vector<2x64xf32>
    %cst_41 = arith.constant dense<0.000000e+00> : vector<2x256xf32>
    %197 = tpu.matmul %196, %11, %cst_41 {dimension_numbers = #tpu.dot_dimension_numbers<[1], [0], [0], [1], [0, 0, 1, 1], [], []>} : vector<2x64xf32>, vector<64x256xf32>, vector<2x256xf32> -> vector<2x256xf32>
    %198 = vector.broadcast %12 : vector<1x256xf32> to vector<2x256xf32>
    %199 = arith.addf %197, %198 : vector<2x256xf32>
    %200 = vector.extract_strided_slice %199 {offsets = [0, 0], sizes = [2, 128], strides = [1, 1]} : vector<2x256xf32> to vector<2x128xf32>
    %201 = arith.addf %200, %8 : vector<2x128xf32>
    %202 = math.tanh %201 : vector<2x128xf32>
    %cst_42 = arith.constant 5.000000e-01 : f32
    %203 = vector.broadcast %cst_42 : f32 to vector<2x128xf32>
    %204 = arith.mulf %203, %202 : vector<2x128xf32>
    %cst_43 = arith.constant 5.000000e-01 : f32
    %205 = vector.broadcast %cst_43 : f32 to vector<2x128xf32>
    %206 = arith.addf %204, %205 : vector<2x128xf32>
    %207 = arith.select %18, %202, %206 : vector<2x128xi1>, vector<2x128xf32>
    %208 = vector.extract_strided_slice %207 {offsets = [0, 0], sizes = [2, 32], strides = [1, 1]} : vector<2x128xf32> to vector<2x32xf32>
    %209 = vector.extract_strided_slice %207 {offsets = [0, 32], sizes = [2, 32], strides = [1, 1]} : vector<2x128xf32> to vector<2x32xf32>
    %210 = vector.extract_strided_slice %207 {offsets = [0, 64], sizes = [2, 32], strides = [1, 1]} : vector<2x128xf32> to vector<2x32xf32>
    %211 = vector.extract_strided_slice %207 {offsets = [0, 96], sizes = [2, 32], strides = [1, 1]} : vector<2x128xf32> to vector<2x32xf32>
    %212 = arith.mulf %209, %177 : vector<2x32xf32>
    %213 = arith.mulf %208, %210 : vector<2x32xf32>
    %214 = arith.addf %212, %213 : vector<2x32xf32>
    %215 = math.tanh %214 : vector<2x32xf32>
    %216 = arith.mulf %211, %215 : vector<2x32xf32>
    %217 = vector.extract_strided_slice %199 {offsets = [0, 128], sizes = [2, 128], strides = [1, 1]} : vector<2x256xf32> to vector<2x128xf32>
    %218 = math.tanh %217 : vector<2x128xf32>
    %cst_44 = arith.constant 5.000000e-01 : f32
    %219 = vector.broadcast %cst_44 : f32 to vector<2x128xf32>
    %220 = arith.mulf %219, %218 : vector<2x128xf32>
    %cst_45 = arith.constant 5.000000e-01 : f32
    %221 = vector.broadcast %cst_45 : f32 to vector<2x128xf32>
    %222 = arith.addf %220, %221 : vector<2x128xf32>
    %223 = arith.select %18, %218, %222 : vector<2x128xi1>, vector<2x128xf32>
    %224 = vector.extract_strided_slice %223 {offsets = [0, 0], sizes = [2, 32], strides = [1, 1]} : vector<2x128xf32> to vector<2x32xf32>
    %225 = vector.extract_strided_slice %223 {offsets = [0, 32], sizes = [2, 32], strides = [1, 1]} : vector<2x128xf32> to vector<2x32xf32>
    %226 = vector.extract_strided_slice %223 {offsets = [0, 64], sizes = [2, 32], strides = [1, 1]} : vector<2x128xf32> to vector<2x32xf32>
    %227 = vector.extract_strided_slice %223 {offsets = [0, 96], sizes = [2, 32], strides = [1, 1]} : vector<2x128xf32> to vector<2x32xf32>
    %228 = arith.mulf %225, %193 : vector<2x32xf32>
    %229 = arith.mulf %224, %226 : vector<2x32xf32>
    %230 = arith.addf %228, %229 : vector<2x32xf32>
    %231 = math.tanh %230 : vector<2x32xf32>
    %232 = arith.mulf %227, %231 : vector<2x32xf32>
    %233 = tpu.concatenate %216, %232 in 1 : vector<2x32xf32>, vector<2x32xf32> -> vector<2x64xf32>
    %cst_46 = arith.constant dense<0.000000e+00> : vector<2x256xf32>
    %234 = tpu.matmul %233, %11, %cst_46 {dimension_numbers = #tpu.dot_dimension_numbers<[1], [0], [0], [1], [0, 0, 1, 1], [], []>} : vector<2x64xf32>, vector<64x256xf32>, vector<2x256xf32> -> vector<2x256xf32>
    %235 = vector.broadcast %12 : vector<1x256xf32> to vector<2x256xf32>
    %236 = arith.addf %234, %235 : vector<2x256xf32>
    %237 = vector.extract_strided_slice %236 {offsets = [0, 0], sizes = [2, 128], strides = [1, 1]} : vector<2x256xf32> to vector<2x128xf32>
    %238 = arith.addf %237, %9 : vector<2x128xf32>
    %239 = math.tanh %238 : vector<2x128xf32>
    %cst_47 = arith.constant 5.000000e-01 : f32
    %240 = vector.broadcast %cst_47 : f32 to vector<2x128xf32>
    %241 = arith.mulf %240, %239 : vector<2x128xf32>
    %cst_48 = arith.constant 5.000000e-01 : f32
    %242 = vector.broadcast %cst_48 : f32 to vector<2x128xf32>
    %243 = arith.addf %241, %242 : vector<2x128xf32>
    %244 = arith.select %18, %239, %243 : vector<2x128xi1>, vector<2x128xf32>
    %245 = vector.extract_strided_slice %244 {offsets = [0, 0], sizes = [2, 32], strides = [1, 1]} : vector<2x128xf32> to vector<2x32xf32>
    %246 = vector.extract_strided_slice %244 {offsets = [0, 32], sizes = [2, 32], strides = [1, 1]} : vector<2x128xf32> to vector<2x32xf32>
    %247 = vector.extract_strided_slice %244 {offsets = [0, 64], sizes = [2, 32], strides = [1, 1]} : vector<2x128xf32> to vector<2x32xf32>
    %248 = vector.extract_strided_slice %244 {offsets = [0, 96], sizes = [2, 32], strides = [1, 1]} : vector<2x128xf32> to vector<2x32xf32>
    %249 = arith.mulf %246, %214 : vector<2x32xf32>
    %250 = arith.mulf %245, %247 : vector<2x32xf32>
    %251 = arith.addf %249, %250 : vector<2x32xf32>
    %252 = math.tanh %251 : vector<2x32xf32>
    %253 = arith.mulf %248, %252 : vector<2x32xf32>
    %254 = vector.extract_strided_slice %236 {offsets = [0, 128], sizes = [2, 128], strides = [1, 1]} : vector<2x256xf32> to vector<2x128xf32>
    %255 = math.tanh %254 : vector<2x128xf32>
    %cst_49 = arith.constant 5.000000e-01 : f32
    %256 = vector.broadcast %cst_49 : f32 to vector<2x128xf32>
    %257 = arith.mulf %256, %255 : vector<2x128xf32>
    %cst_50 = arith.constant 5.000000e-01 : f32
    %258 = vector.broadcast %cst_50 : f32 to vector<2x128xf32>
    %259 = arith.addf %257, %258 : vector<2x128xf32>
    %260 = arith.select %18, %255, %259 : vector<2x128xi1>, vector<2x128xf32>
    %261 = vector.extract_strided_slice %260 {offsets = [0, 0], sizes = [2, 32], strides = [1, 1]} : vector<2x128xf32> to vector<2x32xf32>
    %262 = vector.extract_strided_slice %260 {offsets = [0, 32], sizes = [2, 32], strides = [1, 1]} : vector<2x128xf32> to vector<2x32xf32>
    %263 = vector.extract_strided_slice %260 {offsets = [0, 64], sizes = [2, 32], strides = [1, 1]} : vector<2x128xf32> to vector<2x32xf32>
    %264 = vector.extract_strided_slice %260 {offsets = [0, 96], sizes = [2, 32], strides = [1, 1]} : vector<2x128xf32> to vector<2x32xf32>
    %265 = arith.mulf %262, %230 : vector<2x32xf32>
    %266 = arith.mulf %261, %263 : vector<2x32xf32>
    %267 = arith.addf %265, %266 : vector<2x32xf32>
    %268 = math.tanh %267 : vector<2x32xf32>
    %269 = arith.mulf %264, %268 : vector<2x32xf32>
    %270 = tpu.concatenate %253, %269 in 1 : vector<2x32xf32>, vector<2x32xf32> -> vector<2x64xf32>
    %cst_51 = arith.constant dense<0.000000e+00> : vector<2x256xf32>
    %271 = tpu.matmul %270, %11, %cst_51 {dimension_numbers = #tpu.dot_dimension_numbers<[1], [0], [0], [1], [0, 0, 1, 1], [], []>} : vector<2x64xf32>, vector<64x256xf32>, vector<2x256xf32> -> vector<2x256xf32>
    %272 = vector.broadcast %12 : vector<1x256xf32> to vector<2x256xf32>
    %273 = arith.addf %271, %272 : vector<2x256xf32>
    %274 = vector.extract_strided_slice %273 {offsets = [0, 0], sizes = [2, 128], strides = [1, 1]} : vector<2x256xf32> to vector<2x128xf32>
    %275 = arith.addf %274, %10 : vector<2x128xf32>
    %276 = math.tanh %275 : vector<2x128xf32>
    %cst_52 = arith.constant 5.000000e-01 : f32
    %277 = vector.broadcast %cst_52 : f32 to vector<2x128xf32>
    %278 = arith.mulf %277, %276 : vector<2x128xf32>
    %cst_53 = arith.constant 5.000000e-01 : f32
    %279 = vector.broadcast %cst_53 : f32 to vector<2x128xf32>
    %280 = arith.addf %278, %279 : vector<2x128xf32>
    %281 = arith.select %18, %276, %280 : vector<2x128xi1>, vector<2x128xf32>
    %282 = vector.extract_strided_slice %281 {offsets = [0, 0], sizes = [2, 32], strides = [1, 1]} : vector<2x128xf32> to vector<2x32xf32>
    %283 = vector.extract_strided_slice %281 {offsets = [0, 32], sizes = [2, 32], strides = [1, 1]} : vector<2x128xf32> to vector<2x32xf32>
    %284 = vector.extract_strided_slice %281 {offsets = [0, 64], sizes = [2, 32], strides = [1, 1]} : vector<2x128xf32> to vector<2x32xf32>
    %285 = vector.extract_strided_slice %281 {offsets = [0, 96], sizes = [2, 32], strides = [1, 1]} : vector<2x128xf32> to vector<2x32xf32>
    %286 = arith.mulf %283, %251 : vector<2x32xf32>
    %287 = arith.mulf %282, %284 : vector<2x32xf32>
    %288 = arith.addf %286, %287 : vector<2x32xf32>
    %289 = math.tanh %288 : vector<2x32xf32>
    %290 = arith.mulf %285, %289 : vector<2x32xf32>
    %291 = vector.extract_strided_slice %273 {offsets = [0, 128], sizes = [2, 128], strides = [1, 1]} : vector<2x256xf32> to vector<2x128xf32>
    %292 = math.tanh %291 : vector<2x128xf32>
    %cst_54 = arith.constant 5.000000e-01 : f32
    %293 = vector.broadcast %cst_54 : f32 to vector<2x128xf32>
    %294 = arith.mulf %293, %292 : vector<2x128xf32>
    %cst_55 = arith.constant 5.000000e-01 : f32
    %295 = vector.broadcast %cst_55 : f32 to vector<2x128xf32>
    %296 = arith.addf %294, %295 : vector<2x128xf32>
    %297 = arith.select %18, %292, %296 : vector<2x128xi1>, vector<2x128xf32>
    %298 = vector.extract_strided_slice %297 {offsets = [0, 0], sizes = [2, 32], strides = [1, 1]} : vector<2x128xf32> to vector<2x32xf32>
    %299 = vector.extract_strided_slice %297 {offsets = [0, 32], sizes = [2, 32], strides = [1, 1]} : vector<2x128xf32> to vector<2x32xf32>
    %300 = vector.extract_strided_slice %297 {offsets = [0, 64], sizes = [2, 32], strides = [1, 1]} : vector<2x128xf32> to vector<2x32xf32>
    %301 = vector.extract_strided_slice %297 {offsets = [0, 96], sizes = [2, 32], strides = [1, 1]} : vector<2x128xf32> to vector<2x32xf32>
    %302 = arith.mulf %299, %267 : vector<2x32xf32>
    %303 = arith.mulf %298, %300 : vector<2x32xf32>
    %304 = arith.addf %302, %303 : vector<2x32xf32>
    %305 = math.tanh %304 : vector<2x32xf32>
    %306 = arith.mulf %301, %305 : vector<2x32xf32>
    %307 = tpu.concatenate %290, %306 in 1 : vector<2x32xf32>, vector<2x32xf32> -> vector<2x64xf32>
    %cst_56 = arith.constant dense<0.000000e+00> : vector<2x256xf32>
    %308 = tpu.matmul %307, %11, %cst_56 {dimension_numbers = #tpu.dot_dimension_numbers<[1], [0], [0], [1], [0, 0, 1, 1], [], []>} : vector<2x64xf32>, vector<64x256xf32>, vector<2x256xf32> -> vector<2x256xf32>
    %309 = vector.broadcast %12 : vector<1x256xf32> to vector<2x256xf32>
    %310 = arith.addf %308, %309 : vector<2x256xf32>
    %311 = vector.extract_strided_slice %310 {offsets = [0, 128], sizes = [2, 128], strides = [1, 1]} : vector<2x256xf32> to vector<2x128xf32>
    %312 = math.tanh %311 : vector<2x128xf32>
    %cst_57 = arith.constant 5.000000e-01 : f32
    %313 = vector.broadcast %cst_57 : f32 to vector<2x128xf32>
    %314 = arith.mulf %313, %312 : vector<2x128xf32>
    %cst_58 = arith.constant 5.000000e-01 : f32
    %315 = vector.broadcast %cst_58 : f32 to vector<2x128xf32>
    %316 = arith.addf %314, %315 : vector<2x128xf32>
    %317 = arith.select %18, %312, %316 : vector<2x128xi1>, vector<2x128xf32>
    %318 = vector.extract_strided_slice %317 {offsets = [0, 0], sizes = [2, 32], strides = [1, 1]} : vector<2x128xf32> to vector<2x32xf32>
    %319 = vector.extract_strided_slice %317 {offsets = [0, 32], sizes = [2, 32], strides = [1, 1]} : vector<2x128xf32> to vector<2x32xf32>
    %320 = vector.extract_strided_slice %317 {offsets = [0, 64], sizes = [2, 32], strides = [1, 1]} : vector<2x128xf32> to vector<2x32xf32>
    %321 = vector.extract_strided_slice %317 {offsets = [0, 96], sizes = [2, 32], strides = [1, 1]} : vector<2x128xf32> to vector<2x32xf32>
    %322 = arith.mulf %319, %304 : vector<2x32xf32>
    %323 = arith.mulf %318, %320 : vector<2x32xf32>
    %324 = arith.addf %322, %323 : vector<2x32xf32>
    %325 = math.tanh %324 : vector<2x32xf32>
    %326 = arith.mulf %321, %325 : vector<2x32xf32>
    %c0_59 = arith.constant 0 : index
    %c0_60 = arith.constant 0 : index
    %c0_61 = arith.constant 0 : index
    %327 = vector.load %arg8[%c0_59, %c0_60, %c0_61] : memref<2x2x32xf32, #tpu.memory_space<vmem>>, vector<1x2x32xf32>
    %328 = vector.shape_cast %327 : vector<1x2x32xf32> to vector<2x32xf32>
    %329 = vector.shape_cast %290 : vector<2x32xf32> to vector<1x2x32xf32>
    tpu.vector_store %arg8[%c0_59, %c0_60, %c0_61], %329 {strides = array<i32>} : memref<2x2x32xf32, #tpu.memory_space<vmem>>, vector<1x2x32xf32>,
    %c1_62 = arith.constant 1 : index
    %c0_63 = arith.constant 0 : index
    %c0_64 = arith.constant 0 : index
    %330 = vector.load %arg8[%c1_62, %c0_63, %c0_64] : memref<2x2x32xf32, #tpu.memory_space<vmem>>, vector<1x2x32xf32>
    %331 = vector.shape_cast %330 : vector<1x2x32xf32> to vector<2x32xf32>
    %332 = vector.shape_cast %326 : vector<2x32xf32> to vector<1x2x32xf32>
    tpu.vector_store %arg8[%c1_62, %c0_63, %c0_64], %332 {strides = array<i32>} : memref<2x2x32xf32, #tpu.memory_space<vmem>>, vector<1x2x32xf32>,
    %c0_65 = arith.constant 0 : index
    %c0_66 = arith.constant 0 : index
    %333 = vector.load %arg5[%c0_65, %c0_66] : memref<1x32xf32, #tpu.memory_space<vmem>>, vector<1x32xf32>
    %334 = vector.broadcast %333 : vector<1x32xf32> to vector<2x32xf32>
    %335 = arith.mulf %326, %334 : vector<2x32xf32>
    %cst_67 = arith.constant dense<0.000000e+00> : vector<2xf32>
    %336 = vector.multi_reduction <add>, %335, %cst_67 [1] : vector<2x32xf32> to vector<2xf32>
    %337 = vector.shape_cast %336 : vector<2xf32> to vector<2x1xf32>
    %c0_68 = arith.constant 0 : index
    %c0_69 = arith.constant 0 : index
    %338 = vector.load %arg6[%c0_68, %c0_69] : memref<1x1xf32, #tpu.memory_space<vmem>>, vector<1x1xf32>
    %339 = vector.broadcast %338 : vector<1x1xf32> to vector<2x1xf32>
    %340 = arith.addf %337, %339 : vector<2x1xf32>
    %c0_70 = arith.constant 0 : index
    %c0_71 = arith.constant 0 : index
    %341 = vector.load %arg7[%c0_70, %c0_71] : memref<2x1xf32, #tpu.memory_space<vmem>>, vector<2x1xf32>
    tpu.vector_store %arg7[%c0_70, %c0_71], %340 {strides = array<i32>} : memref<2x1xf32, #tpu.memory_space<vmem>>, vector<2x1xf32>,
    return
  }
}

</mosaic_0001>

<llo_original>
// kernel: net_forward.1
$region0: #{net_forward.1}
  #allocation0 [shape = 'u32[]', space=smem, size = 0x4, offset = 0x4, fixed_abs, tag = 'smem constant byte address 0x4 - core index']
  #allocation1 [shape = 'u32[144,128]{1,0:T(1,128)}', space=vmem, size = 0x12000, scoped, tag = 'internal scratch']
  #allocation2 [shape = 'f32[1,1]{1,0:T(1,128)S(1)}', space=vmem, size = 0x200, scoped, tag = 'scoped memory for net_forward.1']
  %s0 = inlined_call_operand.vmem [shape: f32[16,4], index: 0, kind: input, shape index: {}]
  %s1 = inlined_call_operand.vmem [shape: f32[2,2,32], index: 1, kind: input, shape index: {}]
  %s2 = inlined_call_operand.vmem [shape: f32[4,128], index: 2, kind: input, shape index: {}]
  %s3 = inlined_call_operand.hbm [shape: f32[64,256], index: 3, kind: input, shape index: {}]
  %s4 = inlined_call_operand.vmem [shape: f32[1,256], index: 4, kind: input, shape index: {}]
  %s5 = inlined_call_operand.vmem [shape: f32[1,32], index: 5, kind: input, shape index: {}]
  %s6 = inlined_call_operand.<no memory space> [shape: f32[1,1], index: 6, kind: input, shape index: {}]
  %s7 = inlined_call_operand.vmem [shape: f32[2,1], index: 7, kind: output, shape index: {0}]
  %s8 = inlined_call_operand.hbm [shape: f32[2,2,32], index: 8, kind: output, shape index: {1}]
  %9 = xla_tuple %s7, %s8
  %s10 = sld [smem:[#allocation0]]
  $region50: #{net_forward.1} parent=0
    _
  %s12 = ssub.s32 1, %s10
  %s13 = scalar_select 0, %s12, %s10
  %v14 = vstv %s6
  %15 = vst [vmem:[#allocation2] sm:$0x1] %v14
  $region1: #{net_forward.1} parent=0
    #allocation3 [shape = 'u8[65536]{0}', space=vmem, size = 0x10000, scoped, tag = 'input window, operand 3, single buffered']
    #allocation4 [shape = 's32[1]{0}', space=sflag, size = 0x4, scoped, tag = 'scoped memory for net_forward.1']
    #allocation5 [shape = 's32[1]{0}', space=sflag, size = 0x4, scoped, tag = 'scoped memory for net_forward.1']
    #allocation6 [shape = 'u8[2048]{0}', space=vmem, size = 0x800, scoped, tag = 'output window, operand 1, single buffered']
    %16 = vsyncpa [#allocation4], 0
    %17 = vsyncpa [#allocation5], 0
    // Predicated region
    $region2: #{net_forward.1} parent=1 // pred_check
      _
    $region3: #{net_forward.1} parent=1 // pred_check_branch
      %19 = sbr.rel (0) target = $region5
    $region4: #{net_forward.1} parent=1 // pred_region
      _
    $region5: #{net_forward.1} parent=1 // pred_fallthru
      _
    // Predicated region
    $region6: #{net_forward.1} parent=1 // pred_check
      _
    $region7: #{net_forward.1} parent=1 // pred_check_branch
      %21 = sbr.rel (0) target = $region9
    $region8: #{net_forward.1} parent=1 // pred_region
      _
    $region9: #{net_forward.1} parent=1 // pred_fallthru
      _
    // Predicated region
    $region10: #{net_forward.1} parent=1 // pred_check
      _
    $region11: #{net_forward.1} parent=1 // pred_check_branch
      %23 = sbr.rel (0) target = $region13
    $region12: #{net_forward.1} parent=1 // pred_region
      _
    $region13: #{net_forward.1} parent=1 // pred_fallthru
      _
    // Predicated region
    $region14: #{net_forward.1} parent=1 // pred_check
      _
    $region15: #{net_forward.1} parent=1 // pred_check_branch
      %25 = sbr.rel (0) target = $region17
    $region16: #{net_forward.1} parent=1 // pred_region
      %s27 = ssub.s32 2048, 2048
      %28 = vsyncadd [#allocation4], %s27
      %s29 = sshll.u32 [#allocation3], 4
      %s30 = int_to_ptr.vmem [resolvable:$true] %s29
      %35 = dma.hbm_to_vmem [thread:$0]  %s3, 2048, %s30, [#allocation4], 256, 256, 16
    $region17: #{net_forward.1} parent=1 // pred_fallthru
      _
    // Predicated region
    $region18: #{net_forward.1} parent=1 // pred_check
      _
    $region19: #{net_forward.1} parent=1 // pred_check_branch
      %37 = sbr.rel (0) target = $region21
    $region20: #{net_forward.1} parent=1 // pred_region
      _
    $region21: #{net_forward.1} parent=1 // pred_fallthru
      _
    // Predicated region
    $region22: #{net_forward.1} parent=1 // pred_check
      _
    $region23: #{net_forward.1} parent=1 // pred_check_branch
      %39 = sbr.rel (0) target = $region25
    $region24: #{net_forward.1} parent=1 // pred_region
      _
    $region25: #{net_forward.1} parent=1 // pred_fallthru
      _
    // Predicated region
    $region26: #{net_forward.1} parent=1 // pred_check
      _
    $region27: #{net_forward.1} parent=1 // pred_check_branch
      %41 = sbr.rel (0) target = $region29
    $region28: #{net_forward.1} parent=1 // pred_region
      _
    $region29: #{net_forward.1} parent=1 // pred_fallthru
      _
    // Predicated region
    $region30: #{net_forward.1} parent=1 // pred_check
      _
    $region31: #{net_forward.1} parent=1 // pred_check_branch
      %43 = sbr.rel (0) target = $region33
    $region32: #{net_forward.1} parent=1 // pred_region
      %44 = dma.done [#allocation4], 2048
    $region33: #{net_forward.1} parent=1 // pred_fallthru
      _
    %v45 = vld [vmem:[%s0] sm:$0xff]
    %v46 = vld [vmem:[%s0 + $0x8] sm:$0xff]
    %v47 = vld [vmem:[%s2] sm:$0xf]
    %vm48 = vcmask 31744
    %v50 = vsel %vm48, %v45, 0
    %v53 = vsel %vm48, %v46, 0
    %vm55 = vcmask 1043456
    %v57 = vsel %vm55, %v47, 0
    %59 = vmatprep.subr.mxu0 0.0
    %60 = vmatpush1.msra.mxu0 0.0
    %61 = vmatprep.subr.mxu0 0.0
    %62 = vmatpush1.msra.mxu0 0.0
    %63 = vmatprep.subr.mxu0 0.0
    %64 = vmatpush1.msra.mxu0 0.0
    %65 = vmatprep.subr.mxu0 0.0
    %66 = vmatpush1.msra.mxu0 0.0
    %67 = vmatprep.subr.mxu0 0.0
    %68 = vmatpush1.msra.mxu0 0.0
    %69 = vmatprep.subr.mxu0 0.0
    %70 = vmatpush1.msra.mxu0 0.0
    %71 = vmatprep.subr.mxu0 0.0
    %72 = vmatpush1.msra.mxu0 0.0
    %73 = vmatprep.subr.mxu0 0.0
    %74 = vmatpush1.msra.mxu0 0.0
    %75 = vmatprep.subr.mxu0 0.0
    %76 = vmatpush1.msra.mxu0 0.0
    %77 = vmatprep.subr.mxu0 0.0
    %78 = vmatpush1.msra.mxu0 0.0
    %79 = vmatprep.subr.mxu0 0.0
    %80 = vmatpush1.msra.mxu0 0.0
    %81 = vmatprep.subr.mxu0 0.0
    %82 = vmatpush1.msra.mxu0 0.0
    %83 = vmatprep.subr.mxu0 0.0
    %84 = vmatpush1.msra.mxu0 0.0
    %85 = vmatprep.subr.mxu0 0.0
    %86 = vmatpush1.msra.mxu0 0.0
    %87 = vmatprep.subr.mxu0 0.0
    %88 = vmatpush1.msra.mxu0 0.0
    %89 = vmatprep.subr.mxu0 0.0
    %90 = vmatpush1.msra.mxu0 %v57
    %91 = vmatprep.subr.mxu0 0.0
    %92 = vmatpush2.msra.mxu0 0.0
    %93 = vmatprep.subr.mxu0 0.0
    %94 = vmatpush2.msra.mxu0 0.0
    %95 = vmatprep.subr.mxu0 0.0
    %96 = vmatpush2.msra.mxu0 0.0
    %97 = vmatprep.subr.mxu0 0.0
    %98 = vmatpush2.msra.mxu0 0.0
    %99 = vmatprep.subr.mxu0 0.0
    %100 = vmatpush2.msra.mxu0 0.0
    %101 = vmatprep.subr.mxu0 0.0
    %102 = vmatpush2.msra.mxu0 0.0
    %103 = vmatprep.subr.mxu0 0.0
    %104 = vmatpush2.msra.mxu0 0.0
    %105 = vmatprep.subr.mxu0 0.0
    %106 = vmatpush2.msra.mxu0 0.0
    %107 = vmatprep.subr.mxu0 0.0
    %108 = vmatpush2.msra.mxu0 0.0
    %109 = vmatprep.subr.mxu0 0.0
    %110 = vmatpush2.msra.mxu0 0.0
    %111 = vmatprep.subr.mxu0 0.0
    %112 = vmatpush2.msra.mxu0 0.0
    %113 = vmatprep.subr.mxu0 0.0
    %114 = vmatpush2.msra.mxu0 0.0
    %115 = vmatprep.subr.mxu0 0.0
    %116 = vmatpush2.msra.mxu0 0.0
    %117 = vmatprep.subr.mxu0 0.0
    %118 = vmatpush2.msra.mxu0 0.0
    %119 = vmatprep.subr.mxu0 0.0
    %120 = vmatpush2.msra.mxu0 0.0
    %121 = vmatprep.subr.mxu0 0.0
    %122 = vmatpush2.msra.mxu0 0.0
    %123 = vmatprep.mubr.f32.mxu0 0.0
    %124 = vmatmul.mubr.f32.gmra.mxu0 %v50
    %v125 = vpop.f32.mrf.mxu0
    %v126 = vadd.f32 0.0, %v125
    %v127 = vpop.f32.mrf.mxu0
    %128 = vmatprep.mubr.f32.mxu0 0.0
    %129 = vmatmul.mubr.f32.gmra.mxu0 %v53
    %v130 = vpop.f32.mrf.mxu0
    %v131 = vadd.f32 0.0, %v130
    %v132 = vpop.f32.mrf.mxu0
    %133 = vdwg.mxu0
    %v134 = vld [vmem:[#allocation3] sm:$0xff]
    %v135 = vld [vmem:[#allocation3 + $0x8] sm:$0xff]
    %v136 = vld [vmem:[#allocation3 + $0x10] sm:$0xff]
    %v137 = vld [vmem:[#allocation3 + $0x18] sm:$0xff]
    %v138 = vld [vmem:[#allocation3 + $0x20] sm:$0xff]
    %v139 = vld [vmem:[#allocation3 + $0x28] sm:$0xff]
    %v140 = vld [vmem:[#allocation3 + $0x30] sm:$0xff]
    %v141 = vld [vmem:[#allocation3 + $0x38] sm:$0xff]
    %v142 = vld [vmem:[#allocation3 + $0x40] sm:$0xff]
    %v143 = vld [vmem:[#allocation3 + $0x48] sm:$0xff]
    %v144 = vld [vmem:[#allocation3 + $0x50] sm:$0xff]
    %v145 = vld [vmem:[#allocation3 + $0x58] sm:$0xff]
    %v146 = vld [vmem:[#allocation3 + $0x60] sm:$0xff]
    %v147 = vld [vmem:[#allocation3 + $0x68] sm:$0xff]
    %v148 = vld [vmem:[#allocation3 + $0x70] sm:$0xff]
    %v149 = vld [vmem:[#allocation3 + $0x78] sm:$0xff]
    %v150 = vld [vmem:[%s4] sm:$0x3]
    %v151 = vlaneseq
    %v152 = vand.u32 %v151, 127
    %vm153 = vcmp.ge.s32.totalorder %v152, 64
    %vm154 = vcmp.lt.s32.totalorder %v152, 96
    %vm155 = vmand %vm153, %vm154
    %v156 = vld [vmem:[%s1] sm:$0x3]
    %s157 = scalar_lea.vmem %s1, 2
    %v158 = vld [vmem:[%s157] sm:$0x3]
    %160 = vrot.lane.b32.xlu0 %v158, 32
    %v161 = vpop.permute.xlu0 %160
    %vm163 = vcmask 261120
    %v164 = vsel %vm163, %v156, %v161
    %v166 = vlaneseq
    %v167 = vshrl.u32 %v166, 7
    %v168 = vsub.s32 0, %v167
    %v169 = vrot.slane %v150, %v168
    %v170 = vlaneseq
    %v171 = vshrl.u32 %v170, 7
    %v172 = vsub.s32 1, %v171
    %v173 = vrot.slane %v150, %v172
    %vm176 = vcmask 523264
    %v178 = vsel %vm176, %v164, 0
    %180 = vmatprep.subr.mxu0 0.0
    %181 = vmatpush1.msra.mxu0 0.0
    %182 = vmatprep.subr.mxu0 0.0
    %183 = vmatpush1.msra.mxu0 0.0
    %184 = vmatprep.subr.mxu0 0.0
    %185 = vmatpush1.msra.mxu0 0.0
    %186 = vmatprep.subr.mxu0 0.0
    %187 = vmatpush1.msra.mxu0 0.0
    %188 = vmatprep.subr.mxu0 0.0
    %189 = vmatpush1.msra.mxu0 0.0
    %190 = vmatprep.subr.mxu0 0.0
    %191 = vmatpush1.msra.mxu0 0.0
    %192 = vmatprep.subr.mxu0 0.0
    %193 = vmatpush1.msra.mxu0 0.0
    %194 = vmatprep.subr.mxu0 0.0
    %195 = vmatpush1.msra.mxu0 0.0
    %196 = vmatprep.subr.mxu0 %v149
    %197 = vmatpush1.msra.mxu0 %v148
    %198 = vmatprep.subr.mxu0 %v147
    %199 = vmatpush1.msra.mxu0 %v146
    %200 = vmatprep.subr.mxu0 %v145
    %201 = vmatpush1.msra.mxu0 %v144
    %202 = vmatprep.subr.mxu0 %v143
    %203 = vmatpush1.msra.mxu0 %v142
    %204 = vmatprep.subr.mxu0 %v141
    %205 = vmatpush1.msra.mxu0 %v140
    %206 = vmatprep.subr.mxu0 %v139
    %207 = vmatpush1.msra.mxu0 %v138
    %208 = vmatprep.subr.mxu0 %v137
    %209 = vmatpush1.msra.mxu0 %v136
    %210 = vmatprep.subr.mxu0 %v135
    %211 = vmatpush1.msra.mxu0 %v134
    %212 = vmatprep.subr.mxu0 0.0
    %213 = vmatpush2.msra.mxu0 0.0
    %214 = vmatprep.subr.mxu0 0.0
    %215 = vmatpush2.msra.mxu0 0.0
    %216 = vmatprep.subr.mxu0 0.0
    %217 = vmatpush2.msra.mxu0 0.0
    %218 = vmatprep.subr.mxu0 0.0
    %219 = vmatpush2.msra.mxu0 0.0
    %220 = vmatprep.subr.mxu0 0.0
    %221 = vmatpush2.msra.mxu0 0.0
    %222 = vmatprep.subr.mxu0 0.0
    %223 = vmatpush2.msra.mxu0 0.0
    %224 = vmatprep.subr.mxu0 0.0
    %225 = vmatpush2.msra.mxu0 0.0
    %226 = vmatprep.subr.mxu0 0.0
    %227 = vmatpush2.msra.mxu0 0.0
    %228 = vmatprep.subr.mxu0 0.0
    %229 = vmatpush2.msra.mxu0 0.0
    %230 = vmatprep.subr.mxu0 0.0
    %231 = vmatpush2.msra.mxu0 0.0
    %232 = vmatprep.subr.mxu0 0.0
    %233 = vmatpush2.msra.mxu0 0.0
    %234 = vmatprep.subr.mxu0 0.0
    %235 = vmatpush2.msra.mxu0 0.0
    %236 = vmatprep.subr.mxu0 0.0
    %237 = vmatpush2.msra.mxu0 0.0
    %238 = vmatprep.subr.mxu0 0.0
    %239 = vmatpush2.msra.mxu0 0.0
    %240 = vmatprep.subr.mxu0 0.0
    %241 = vmatpush2.msra.mxu0 0.0
    %242 = vmatprep.subr.mxu0 0.0
    %243 = vmatpush2.msra.mxu0 0.0
    %244 = vmatprep.mubr.f32.mxu0 0.0
    %245 = vmatmul.mubr.f32.gmra.mxu0 %v178
    %v246 = vpop.f32.mrf.mxu0
    %v247 = vadd.f32 %v169, %v246
    %v248 = vpop.f32.mrf.mxu0
    %249 = vdwg.mxu0
    %v250 = vadd.f32 %v247, %v126
    %v251 = vtanh.pop %v250
    %v252 = vmul.f32 %v251, 0.5
    %v253 = vadd.f32 %v252, 0.5
    %v254 = vsel %vm155, %v251, %v253
    %256 = vrot.lane.b32.xlu0 %v156, 32
    %v257 = vpop.permute.xlu0 %256
    %v259 = vmul.f32 %v254, %v257
    %261 = vrot.lane.b32.xlu0 %v254, 64
    %v262 = vpop.permute.xlu0 %261
    %v264 = vmul.f32 %v254, %v262
    %266 = vrot.lane.b32.xlu0 %v264, 32
    %v267 = vpop.permute.xlu0 %266
    %v269 = vadd.f32 %v259, %v267
    %v270 = vtanh.pop %v269
    %272 = vrot.lane.b32.xlu0 %v270, 64
    %v273 = vpop.permute.xlu0 %272
    %v275 = vmul.f32 %v254, %v273
    %277 = vrot.lane.b32.xlu0 %v275, 32
    %v278 = vpop.permute.xlu0 %277
    %v280 = vsel %vm163, %v278, %v161
    %v282 = vsel %vm176, %v280, 0
    %284 = vmatprep.subr.mxu0 0.0
    %285 = vmatpush1.msra.mxu0 0.0
    %286 = vmatprep.subr.mxu0 0.0
    %287 = vmatpush1.msra.mxu0 0.0
    %288 = vmatprep.subr.mxu0 0.0
    %289 = vmatpush1.msra.mxu0 0.0
    %290 = vmatprep.subr.mxu0 0.0
    %291 = vmatpush1.msra.mxu0 0.0
    %292 = vmatprep.subr.mxu0 0.0
    %293 = vmatpush1.msra.mxu0 0.0
    %294 = vmatprep.subr.mxu0 0.0
    %295 = vmatpush1.msra.mxu0 0.0
    %296 = vmatprep.subr.mxu0 0.0
    %297 = vmatpush1.msra.mxu0 0.0
    %298 = vmatprep.subr.mxu0 0.0
    %299 = vmatpush1.msra.mxu0 0.0
    %300 = vmatprep.subr.mxu0 %v149
    %301 = vmatpush1.msra.mxu0 %v148
    %302 = vmatprep.subr.mxu0 %v147
    %303 = vmatpush1.msra.mxu0 %v146
    %304 = vmatprep.subr.mxu0 %v145
    %305 = vmatpush1.msra.mxu0 %v144
    %306 = vmatprep.subr.mxu0 %v143
    %307 = vmatpush1.msra.mxu0 %v142
    %308 = vmatprep.subr.mxu0 %v141
    %309 = vmatpush1.msra.mxu0 %v140
    %310 = vmatprep.subr.mxu0 %v139
    %311 = vmatpush1.msra.mxu0 %v138
    %312 = vmatprep.subr.mxu0 %v137
    %313 = vmatpush1.msra.mxu0 %v136
    %314 = vmatprep.subr.mxu0 %v135
    %315 = vmatpush1.msra.mxu0 %v134
    %316 = vmatprep.subr.mxu0 0.0
    %317 = vmatpush2.msra.mxu0 0.0
    %318 = vmatprep.subr.mxu0 0.0
    %319 = vmatpush2.msra.mxu0 0.0
    %320 = vmatprep.subr.mxu0 0.0
    %321 = vmatpush2.msra.mxu0 0.0
    %322 = vmatprep.subr.mxu0 0.0
    %323 = vmatpush2.msra.mxu0 0.0
    %324 = vmatprep.subr.mxu0 0.0
    %325 = vmatpush2.msra.mxu0 0.0
    %326 = vmatprep.subr.mxu0 0.0
    %327 = vmatpush2.msra.mxu0 0.0
    %328 = vmatprep.subr.mxu0 0.0
    %329 = vmatpush2.msra.mxu0 0.0
    %330 = vmatprep.subr.mxu0 0.0
    %331 = vmatpush2.msra.mxu0 0.0
    %332 = vmatprep.subr.mxu0 0.0
    %333 = vmatpush2.msra.mxu0 0.0
    %334 = vmatprep.subr.mxu0 0.0
    %335 = vmatpush2.msra.mxu0 0.0
    %336 = vmatprep.subr.mxu0 0.0
    %337 = vmatpush2.msra.mxu0 0.0
    %338 = vmatprep.subr.mxu0 0.0
    %339 = vmatpush2.msra.mxu0 0.0
    %340 = vmatprep.subr.mxu0 0.0
    %341 = vmatpush2.msra.mxu0 0.0
    %342 = vmatprep.subr.mxu0 0.0
    %343 = vmatpush2.msra.mxu0 0.0
    %344 = vmatprep.subr.mxu0 0.0
    %345 = vmatpush2.msra.mxu0 0.0
    %346 = vmatprep.subr.mxu0 0.0
    %347 = vmatpush2.msra.mxu0 0.0
    %348 = vmatprep.mubr.f32.mxu0 0.0
    %349 = vmatmul.mubr.f32.gmra.mxu0 %v282
    %v350 = vpop.f32.mrf.mxu0
    %v351 = vadd.f32 %v169, %v350
    %v352 = vpop.f32.mrf.mxu0
    %v353 = vadd.f32 %v173, %v352
    %354 = vdwg.mxu0
    %v356 = vrot.slane %v126, 2
    %v358 = vadd.f32 %v351, %v356
    %v359 = vtanh.pop %v358
    %v360 = vmul.f32 %v359, 0.5
    %v361 = vadd.f32 %v360, 0.5
    %v362 = vsel %vm155, %v359, %v361
    %v363 = vmul.f32 %v362, %v269
    %365 = vrot.lane.b32.xlu0 %v362, 64
    %v366 = vpop.permute.xlu0 %365
    %v368 = vmul.f32 %v362, %v366
    %370 = vrot.lane.b32.xlu0 %v368, 32
    %v371 = vpop.permute.xlu0 %370
    %v373 = vadd.f32 %v363, %v371
    %v374 = vtanh.pop %v373
    %376 = vrot.lane.b32.xlu0 %v374, 64
    %v377 = vpop.permute.xlu0 %376
    %v379 = vmul.f32 %v362, %v377
    %v380 = vtanh.pop %v353
    %v381 = vmul.f32 %v380, 0.5
    %v382 = vadd.f32 %v381, 0.5
    %v383 = vsel %vm155, %v380, %v382
    %v384 = vmul.f32 %v383, %v161
    %386 = vrot.lane.b32.xlu0 %v383, 64
    %v387 = vpop.permute.xlu0 %386
    %v389 = vmul.f32 %v383, %v387
    %391 = vrot.lane.b32.xlu0 %v389, 32
    %v392 = vpop.permute.xlu0 %391
    %v394 = vadd.f32 %v384, %v392
    %v395 = vtanh.pop %v394
    %397 = vrot.lane.b32.xlu0 %v395, 64
    %v398 = vpop.permute.xlu0 %397
    %v400 = vmul.f32 %v383, %v398
    %402 = vrot.lane.b32.xlu0 %v379, 32
    %v403 = vpop.permute.xlu0 %402
    %406 = vrot.lane.b32.xlu0 %v400, 64
    %v407 = vpop.permute.xlu0 %406
    %v409 = vsel %vm163, %v403, %v407
    %v411 = vsel %vm176, %v409, 0
    %413 = vmatprep.subr.mxu0 0.0
    %414 = vmatpush1.msra.mxu0 0.0
    %415 = vmatprep.subr.mxu0 0.0
    %416 = vmatpush1.msra.mxu0 0.0
    %417 = vmatprep.subr.mxu0 0.0
    %418 = vmatpush1.msra.mxu0 0.0
    %419 = vmatprep.subr.mxu0 0.0
    %420 = vmatpush1.msra.mxu0 0.0
    %421 = vmatprep.subr.mxu0 0.0
    %422 = vmatpush1.msra.mxu0 0.0
    %423 = vmatprep.subr.mxu0 0.0
    %424 = vmatpush1.msra.mxu0 0.0
    %425 = vmatprep.subr.mxu0 0.0
    %426 = vmatpush1.msra.mxu0 0.0
    %427 = vmatprep.subr.mxu0 0.0
    %428 = vmatpush1.msra.mxu0 0.0
    %429 = vmatprep.subr.mxu0 %v149
    %430 = vmatpush1.msra.mxu0 %v148
    %431 = vmatprep.subr.mxu0 %v147
    %432 = vmatpush1.msra.mxu0 %v146
    %433 = vmatprep.subr.mxu0 %v145
    %434 = vmatpush1.msra.mxu0 %v144
    %435 = vmatprep.subr.mxu0 %v143
    %436 = vmatpush1.msra.mxu0 %v142
    %437 = vmatprep.subr.mxu0 %v141
    %438 = vmatpush1.msra.mxu0 %v140
    %439 = vmatprep.subr.mxu0 %v139
    %440 = vmatpush1.msra.mxu0 %v138
    %441 = vmatprep.subr.mxu0 %v137
    %442 = vmatpush1.msra.mxu0 %v136
    %443 = vmatprep.subr.mxu0 %v135
    %444 = vmatpush1.msra.mxu0 %v134
    %445 = vmatprep.subr.mxu0 0.0
    %446 = vmatpush2.msra.mxu0 0.0
    %447 = vmatprep.subr.mxu0 0.0
    %448 = vmatpush2.msra.mxu0 0.0
    %449 = vmatprep.subr.mxu0 0.0
    %450 = vmatpush2.msra.mxu0 0.0
    %451 = vmatprep.subr.mxu0 0.0
    %452 = vmatpush2.msra.mxu0 0.0
    %453 = vmatprep.subr.mxu0 0.0
    %454 = vmatpush2.msra.mxu0 0.0
    %455 = vmatprep.subr.mxu0 0.0
    %456 = vmatpush2.msra.mxu0 0.0
    %457 = vmatprep.subr.mxu0 0.0
    %458 = vmatpush2.msra.mxu0 0.0
    %459 = vmatprep.subr.mxu0 0.0
    %460 = vmatpush2.msra.mxu0 0.0
    %461 = vmatprep.subr.mxu0 0.0
    %462 = vmatpush2.msra.mxu0 0.0
    %463 = vmatprep.subr.mxu0 0.0
    %464 = vmatpush2.msra.mxu0 0.0
    %465 = vmatprep.subr.mxu0 0.0
    %466 = vmatpush2.msra.mxu0 0.0
    %467 = vmatprep.subr.mxu0 0.0
    %468 = vmatpush2.msra.mxu0 0.0
    %469 = vmatprep.subr.mxu0 0.0
    %470 = vmatpush2.msra.mxu0 0.0
    %471 = vmatprep.subr.mxu0 0.0
    %472 = vmatpush2.msra.mxu0 0.0
    %473 = vmatprep.subr.mxu0 0.0
    %474 = vmatpush2.msra.mxu0 0.0
    %475 = vmatprep.subr.mxu0 0.0
    %476 = vmatpush2.msra.mxu0 0.0
    %477 = vmatprep.mubr.f32.mxu0 0.0
    %478 = vmatmul.mubr.f32.gmra.mxu0 %v411
    %v479 = vpop.f32.mrf.mxu0
    %v480 = vadd.f32 %v169, %v479
    %v481 = vpop.f32.mrf.mxu0
    %v482 = vadd.f32 %v173, %v481
    %483 = vdwg.mxu0
    %v484 = vrot.slane %v126, 4
    %v486 = vadd.f32 %v480, %v484
    %v487 = vtanh.pop %v486
    %v488 = vmul.f32 %v487, 0.5
    %v489 = vadd.f32 %v488, 0.5
    %v490 = vsel %vm155, %v487, %v489
    %v491 = vmul.f32 %v490, %v373
    %493 = vrot.lane.b32.xlu0 %v490, 64
    %v494 = vpop.permute.xlu0 %493
    %v496 = vmul.f32 %v490, %v494
    %498 = vrot.lane.b32.xlu0 %v496, 32
    %v499 = vpop.permute.xlu0 %498
    %v501 = vadd.f32 %v491, %v499
    %v502 = vtanh.pop %v501
    %504 = vrot.lane.b32.xlu0 %v502, 64
    %v505 = vpop.permute.xlu0 %504
    %v507 = vmul.f32 %v490, %v505
    %v508 = vtanh.pop %v482
    %v509 = vmul.f32 %v508, 0.5
    %v510 = vadd.f32 %v509, 0.5
    %v511 = vsel %vm155, %v508, %v510
    %v512 = vmul.f32 %v511, %v394
    %514 = vrot.lane.b32.xlu0 %v511, 64
    %v515 = vpop.permute.xlu0 %514
    %v517 = vmul.f32 %v511, %v515
    %519 = vrot.lane.b32.xlu0 %v517, 32
    %v520 = vpop.permute.xlu0 %519
    %v522 = vadd.f32 %v512, %v520
    %v523 = vtanh.pop %v522
    %525 = vrot.lane.b32.xlu0 %v523, 64
    %v526 = vpop.permute.xlu0 %525
    %v528 = vmul.f32 %v511, %v526
    %530 = vrot.lane.b32.xlu0 %v507, 32
    %v531 = vpop.permute.xlu0 %530
    %534 = vrot.lane.b32.xlu0 %v528, 64
    %v535 = vpop.permute.xlu0 %534
    %v537 = vsel %vm163, %v531, %v535
    %v539 = vsel %vm176, %v537, 0
    %541 = vmatprep.subr.mxu0 0.0
    %542 = vmatpush1.msra.mxu0 0.0
    %543 = vmatprep.subr.mxu0 0.0
    %544 = vmatpush1.msra.mxu0 0.0
    %545 = vmatprep.subr.mxu0 0.0
    %546 = vmatpush1.msra.mxu0 0.0
    %547 = vmatprep.subr.mxu0 0.0
    %548 = vmatpush1.msra.mxu0 0.0
    %549 = vmatprep.subr.mxu0 0.0
    %550 = vmatpush1.msra.mxu0 0.0
    %551 = vmatprep.subr.mxu0 0.0
    %552 = vmatpush1.msra.mxu0 0.0
    %553 = vmatprep.subr.mxu0 0.0
    %554 = vmatpush1.msra.mxu0 0.0
    %555 = vmatprep.subr.mxu0 0.0
    %556 = vmatpush1.msra.mxu0 0.0
    %557 = vmatprep.subr.mxu0 %v149
    %558 = vmatpush1.msra.mxu0 %v148
    %559 = vmatprep.subr.mxu0 %v147
    %560 = vmatpush1.msra.mxu0 %v146
    %561 = vmatprep.subr.mxu0 %v145
    %562 = vmatpush1.msra.mxu0 %v144
    %563 = vmatprep.subr.mxu0 %v143
    %564 = vmatpush1.msra.mxu0 %v142
    %565 = vmatprep.subr.mxu0 %v141
    %566 = vmatpush1.msra.mxu0 %v140
    %567 = vmatprep.subr.mxu0 %v139
    %568 = vmatpush1.msra.mxu0 %v138
    %569 = vmatprep.subr.mxu0 %v137
    %570 = vmatpush1.msra.mxu0 %v136
    %571 = vmatprep.subr.mxu0 %v135
    %572 = vmatpush1.msra.mxu0 %v134
    %573 = vmatprep.subr.mxu0 0.0
    %574 = vmatpush2.msra.mxu0 0.0
    %575 = vmatprep.subr.mxu0 0.0
    %576 = vmatpush2.msra.mxu0 0.0
    %577 = vmatprep.subr.mxu0 0.0
    %578 = vmatpush2.msra.mxu0 0.0
    %579 = vmatprep.subr.mxu0 0.0
    %580 = vmatpush2.msra.mxu0 0.0
    %581 = vmatprep.subr.mxu0 0.0
    %582 = vmatpush2.msra.mxu0 0.0
    %583 = vmatprep.subr.mxu0 0.0
    %584 = vmatpush2.msra.mxu0 0.0
    %585 = vmatprep.subr.mxu0 0.0
    %586 = vmatpush2.msra.mxu0 0.0
    %587 = vmatprep.subr.mxu0 0.0
    %588 = vmatpush2.msra.mxu0 0.0
    %589 = vmatprep.subr.mxu0 0.0
    %590 = vmatpush2.msra.mxu0 0.0
    %591 = vmatprep.subr.mxu0 0.0
    %592 = vmatpush2.msra.mxu0 0.0
    %593 = vmatprep.subr.mxu0 0.0
    %594 = vmatpush2.msra.mxu0 0.0
    %595 = vmatprep.subr.mxu0 0.0
    %596 = vmatpush2.msra.mxu0 0.0
    %597 = vmatprep.subr.mxu0 0.0
    %598 = vmatpush2.msra.mxu0 0.0
    %599 = vmatprep.subr.mxu0 0.0
    %600 = vmatpush2.msra.mxu0 0.0
    %601 = vmatprep.subr.mxu0 0.0
    %602 = vmatpush2.msra.mxu0 0.0
    %603 = vmatprep.subr.mxu0 0.0
    %604 = vmatpush2.msra.mxu0 0.0
    %605 = vmatprep.mubr.f32.mxu0 0.0
    %606 = vmatmul.mubr.f32.gmra.mxu0 %v539
    %v607 = vpop.f32.mrf.mxu0
    %v608 = vadd.f32 %v169, %v607
    %v609 = vpop.f32.mrf.mxu0
    %v610 = vadd.f32 %v173, %v609
    %611 = vdwg.mxu0
    %v612 = vrot.slane %v126, 6
    %v614 = vadd.f32 %v608, %v612
    %v615 = vtanh.pop %v614
    %v616 = vmul.f32 %v615, 0.5
    %v617 = vadd.f32 %v616, 0.5
    %v618 = vsel %vm155, %v615, %v617
    %v619 = vmul.f32 %v618, %v501
    %621 = vrot.lane.b32.xlu0 %v618, 64
    %v622 = vpop.permute.xlu0 %621
    %v624 = vmul.f32 %v618, %v622
    %626 = vrot.lane.b32.xlu0 %v624, 32
    %v627 = vpop.permute.xlu0 %626
    %v629 = vadd.f32 %v619, %v627
    %v630 = vtanh.pop %v629
    %632 = vrot.lane.b32.xlu0 %v630, 64
    %v633 = vpop.permute.xlu0 %632
    %v635 = vmul.f32 %v618, %v633
    %v636 = vtanh.pop %v610
    %v637 = vmul.f32 %v636, 0.5
    %v638 = vadd.f32 %v637, 0.5
    %v639 = vsel %vm155, %v636, %v638
    %v640 = vmul.f32 %v639, %v522
    %642 = vrot.lane.b32.xlu0 %v639, 64
    %v643 = vpop.permute.xlu0 %642
    %v645 = vmul.f32 %v639, %v643
    %647 = vrot.lane.b32.xlu0 %v645, 32
    %v648 = vpop.permute.xlu0 %647
    %v650 = vadd.f32 %v640, %v648
    %v651 = vtanh.pop %v650
    %653 = vrot.lane.b32.xlu0 %v651, 64
    %v654 = vpop.permute.xlu0 %653
    %v656 = vmul.f32 %v639, %v654
    %658 = vrot.lane.b32.xlu0 %v635, 32
    %v659 = vpop.permute.xlu0 %658
    %662 = vrot.lane.b32.xlu0 %v656, 64
    %v663 = vpop.permute.xlu0 %662
    %v665 = vsel %vm163, %v659, %v663
    %v667 = vsel %vm176, %v665, 0
    %669 = vmatprep.subr.mxu0 0.0
    %670 = vmatpush1.msra.mxu0 0.0
    %671 = vmatprep.subr.mxu0 0.0
    %672 = vmatpush1.msra.mxu0 0.0
    %673 = vmatprep.subr.mxu0 0.0
    %674 = vmatpush1.msra.mxu0 0.0
    %675 = vmatprep.subr.mxu0 0.0
    %676 = vmatpush1.msra.mxu0 0.0
    %677 = vmatprep.subr.mxu0 0.0
    %678 = vmatpush1.msra.mxu0 0.0
    %679 = vmatprep.subr.mxu0 0.0
    %680 = vmatpush1.msra.mxu0 0.0
    %681 = vmatprep.subr.mxu0 0.0
    %682 = vmatpush1.msra.mxu0 0.0
    %683 = vmatprep.subr.mxu0 0.0
    %684 = vmatpush1.msra.mxu0 0.0
    %685 = vmatprep.subr.mxu0 %v149
    %686 = vmatpush1.msra.mxu0 %v148
    %687 = vmatprep.subr.mxu0 %v147
    %688 = vmatpush1.msra.mxu0 %v146
    %689 = vmatprep.subr.mxu0 %v145
    %690 = vmatpush1.msra.mxu0 %v144
    %691 = vmatprep.subr.mxu0 %v143
    %692 = vmatpush1.msra.mxu0 %v142
    %693 = vmatprep.subr.mxu0 %v141
    %694 = vmatpush1.msra.mxu0 %v140
    %695 = vmatprep.subr.mxu0 %v139
    %696 = vmatpush1.msra.mxu0 %v138
    %697 = vmatprep.subr.mxu0 %v137
    %698 = vmatpush1.msra.mxu0 %v136
    %699 = vmatprep.subr.mxu0 %v135
    %700 = vmatpush1.msra.mxu0 %v134
    %701 = vmatprep.subr.mxu0 0.0
    %702 = vmatpush2.msra.mxu0 0.0
    %703 = vmatprep.subr.mxu0 0.0
    %704 = vmatpush2.msra.mxu0 0.0
    %705 = vmatprep.subr.mxu0 0.0
    %706 = vmatpush2.msra.mxu0 0.0
    %707 = vmatprep.subr.mxu0 0.0
    %708 = vmatpush2.msra.mxu0 0.0
    %709 = vmatprep.subr.mxu0 0.0
    %710 = vmatpush2.msra.mxu0 0.0
    %711 = vmatprep.subr.mxu0 0.0
    %712 = vmatpush2.msra.mxu0 0.0
    %713 = vmatprep.subr.mxu0 0.0
    %714 = vmatpush2.msra.mxu0 0.0
    %715 = vmatprep.subr.mxu0 0.0
    %716 = vmatpush2.msra.mxu0 0.0
    %717 = vmatprep.subr.mxu0 0.0
    %718 = vmatpush2.msra.mxu0 0.0
    %719 = vmatprep.subr.mxu0 0.0
    %720 = vmatpush2.msra.mxu0 0.0
    %721 = vmatprep.subr.mxu0 0.0
    %722 = vmatpush2.msra.mxu0 0.0
    %723 = vmatprep.subr.mxu0 0.0
    %724 = vmatpush2.msra.mxu0 0.0
    %725 = vmatprep.subr.mxu0 0.0
    %726 = vmatpush2.msra.mxu0 0.0
    %727 = vmatprep.subr.mxu0 0.0
    %728 = vmatpush2.msra.mxu0 0.0
    %729 = vmatprep.subr.mxu0 0.0
    %730 = vmatpush2.msra.mxu0 0.0
    %731 = vmatprep.subr.mxu0 0.0
    %732 = vmatpush2.msra.mxu0 0.0
    %733 = vmatprep.mubr.f32.mxu0 0.0
    %734 = vmatmul.mubr.f32.gmra.mxu0 %v667
    %v735 = vpop.f32.mrf.mxu0
    %v736 = vadd.f32 %v169, %v735
    %v737 = vpop.f32.mrf.mxu0
    %v738 = vadd.f32 %v173, %v737
    %739 = vdwg.mxu0
    %v740 = vadd.f32 %v736, %v131
    %v741 = vtanh.pop %v740
    %v742 = vmul.f32 %v741, 0.5
    %v743 = vadd.f32 %v742, 0.5
    %v744 = vsel %vm155, %v741, %v743
    %v745 = vmul.f32 %v744, %v629
    %747 = vrot.lane.b32.xlu0 %v744, 64
    %v748 = vpop.permute.xlu0 %747
    %v750 = vmul.f32 %v744, %v748
    %752 = vrot.lane.b32.xlu0 %v750, 32
    %v753 = vpop.permute.xlu0 %752
    %v755 = vadd.f32 %v745, %v753
    %v756 = vtanh.pop %v755
    %758 = vrot.lane.b32.xlu0 %v756, 64
    %v759 = vpop.permute.xlu0 %758
    %v761 = vmul.f32 %v744, %v759
    %v762 = vtanh.pop %v738
    %v763 = vmul.f32 %v762, 0.5
    %v764 = vadd.f32 %v763, 0.5
    %v765 = vsel %vm155, %v762, %v764
    %v766 = vmul.f32 %v765, %v650
    %768 = vrot.lane.b32.xlu0 %v765, 64
    %v769 = vpop.permute.xlu0 %768
    %v771 = vmul.f32 %v765, %v769
    %773 = vrot.lane.b32.xlu0 %v771, 32
    %v774 = vpop.permute.xlu0 %773
    %v776 = vadd.f32 %v766, %v774
    %v777 = vtanh.pop %v776
    %779 = vrot.lane.b32.xlu0 %v777, 64
    %v780 = vpop.permute.xlu0 %779
    %v782 = vmul.f32 %v765, %v780
    %784 = vrot.lane.b32.xlu0 %v761, 32
    %v785 = vpop.permute.xlu0 %784
    %788 = vrot.lane.b32.xlu0 %v782, 64
    %v789 = vpop.permute.xlu0 %788
    %v791 = vsel %vm163, %v785, %v789
    %v793 = vsel %vm176, %v791, 0
    %795 = vmatprep.subr.mxu0 0.0
    %796 = vmatpush1.msra.mxu0 0.0
    %797 = vmatprep.subr.mxu0 0.0
    %798 = vmatpush1.msra.mxu0 0.0
    %799 = vmatprep.subr.mxu0 0.0
    %800 = vmatpush1.msra.mxu0 0.0
    %801 = vmatprep.subr.mxu0 0.0
    %802 = vmatpush1.msra.mxu0 0.0
    %803 = vmatprep.subr.mxu0 0.0
    %804 = vmatpush1.msra.mxu0 0.0
    %805 = vmatprep.subr.mxu0 0.0
    %806 = vmatpush1.msra.mxu0 0.0
    %807 = vmatprep.subr.mxu0 0.0
    %808 = vmatpush1.msra.mxu0 0.0
    %809 = vmatprep.subr.mxu0 0.0
    %810 = vmatpush1.msra.mxu0 0.0
    %811 = vmatprep.subr.mxu0 %v149
    %812 = vmatpush1.msra.mxu0 %v148
    %813 = vmatprep.subr.mxu0 %v147
    %814 = vmatpush1.msra.mxu0 %v146
    %815 = vmatprep.subr.mxu0 %v145
    %816 = vmatpush1.msra.mxu0 %v144
    %817 = vmatprep.subr.mxu0 %v143
    %818 = vmatpush1.msra.mxu0 %v142
    %819 = vmatprep.subr.mxu0 %v141
    %820 = vmatpush1.msra.mxu0 %v140
    %821 = vmatprep.subr.mxu0 %v139
    %822 = vmatpush1.msra.mxu0 %v138
    %823 = vmatprep.subr.mxu0 %v137
    %824 = vmatpush1.msra.mxu0 %v136
    %825 = vmatprep.subr.mxu0 %v135
    %826 = vmatpush1.msra.mxu0 %v134
    %827 = vmatprep.subr.mxu0 0.0
    %828 = vmatpush2.msra.mxu0 0.0
    %829 = vmatprep.subr.mxu0 0.0
    %830 = vmatpush2.msra.mxu0 0.0
    %831 = vmatprep.subr.mxu0 0.0
    %832 = vmatpush2.msra.mxu0 0.0
    %833 = vmatprep.subr.mxu0 0.0
    %834 = vmatpush2.msra.mxu0 0.0
    %835 = vmatprep.subr.mxu0 0.0
    %836 = vmatpush2.msra.mxu0 0.0
    %837 = vmatprep.subr.mxu0 0.0
    %838 = vmatpush2.msra.mxu0 0.0
    %839 = vmatprep.subr.mxu0 0.0
    %840 = vmatpush2.msra.mxu0 0.0
    %841 = vmatprep.subr.mxu0 0.0
    %842 = vmatpush2.msra.mxu0 0.0
    %843 = vmatprep.subr.mxu0 0.0
    %844 = vmatpush2.msra.mxu0 0.0
    %845 = vmatprep.subr.mxu0 0.0
    %846 = vmatpush2.msra.mxu0 0.0
    %847 = vmatprep.subr.mxu0 0.0
    %848 = vmatpush2.msra.mxu0 0.0
    %849 = vmatprep.subr.mxu0 0.0
    %850 = vmatpush2.msra.mxu0 0.0
    %851 = vmatprep.subr.mxu0 0.0
    %852 = vmatpush2.msra.mxu0 0.0
    %853 = vmatprep.subr.mxu0 0.0
    %854 = vmatpush2.msra.mxu0 0.0
    %855 = vmatprep.subr.mxu0 0.0
    %856 = vmatpush2.msra.mxu0 0.0
    %857 = vmatprep.subr.mxu0 0.0
    %858 = vmatpush2.msra.mxu0 0.0
    %859 = vmatprep.mubr.f32.mxu0 0.0
    %860 = vmatmul.mubr.f32.gmra.mxu0 %v793
    %v861 = vpop.f32.mrf.mxu0
    %v862 = vadd.f32 %v169, %v861
    %v863 = vpop.f32.mrf.mxu0
    %v864 = vadd.f32 %v173, %v863
    %865 = vdwg.mxu0
    %v867 = vrot.slane %v131, 2
    %v869 = vadd.f32 %v862, %v867
    %v870 = vtanh.pop %v869
    %v871 = vmul.f32 %v870, 0.5
    %v872 = vadd.f32 %v871, 0.5
    %v873 = vsel %vm155, %v870, %v872
    %v874 = vmul.f32 %v873, %v755
    %876 = vrot.lane.b32.xlu0 %v873, 64
    %v877 = vpop.permute.xlu0 %876
    %v879 = vmul.f32 %v873, %v877
    %881 = vrot.lane.b32.xlu0 %v879, 32
    %v882 = vpop.permute.xlu0 %881
    %v884 = vadd.f32 %v874, %v882
    %v885 = vtanh.pop %v884
    %887 = vrot.lane.b32.xlu0 %v885, 64
    %v888 = vpop.permute.xlu0 %887
    %v890 = vmul.f32 %v873, %v888
    %v891 = vtanh.pop %v864
    %v892 = vmul.f32 %v891, 0.5
    %v893 = vadd.f32 %v892, 0.5
    %v894 = vsel %vm155, %v891, %v893
    %v895 = vmul.f32 %v894, %v776
    %897 = vrot.lane.b32.xlu0 %v894, 64
    %v898 = vpop.permute.xlu0 %897
    %v900 = vmul.f32 %v894, %v898
    %902 = vrot.lane.b32.xlu0 %v900, 32
    %v903 = vpop.permute.xlu0 %902
    %v905 = vadd.f32 %v895, %v903
    %v906 = vtanh.pop %v905
    %908 = vrot.lane.b32.xlu0 %v906, 64
    %v909 = vpop.permute.xlu0 %908
    %v911 = vmul.f32 %v894, %v909
    %913 = vrot.lane.b32.xlu0 %v890, 32
    %v914 = vpop.permute.xlu0 %913
    %917 = vrot.lane.b32.xlu0 %v911, 64
    %v918 = vpop.permute.xlu0 %917
    %v920 = vsel %vm163, %v914, %v918
    %v922 = vsel %vm176, %v920, 0
    %924 = vmatprep.subr.mxu0 0.0
    %925 = vmatpush1.msra.mxu0 0.0
    %926 = vmatprep.subr.mxu0 0.0
    %927 = vmatpush1.msra.mxu0 0.0
    %928 = vmatprep.subr.mxu0 0.0
    %929 = vmatpush1.msra.mxu0 0.0
    %930 = vmatprep.subr.mxu0 0.0
    %931 = vmatpush1.msra.mxu0 0.0
    %932 = vmatprep.subr.mxu0 0.0
    %933 = vmatpush1.msra.mxu0 0.0
    %934 = vmatprep.subr.mxu0 0.0
    %935 = vmatpush1.msra.mxu0 0.0
    %936 = vmatprep.subr.mxu0 0.0
    %937 = vmatpush1.msra.mxu0 0.0
    %938 = vmatprep.subr.mxu0 0.0
    %939 = vmatpush1.msra.mxu0 0.0
    %940 = vmatprep.subr.mxu0 %v149
    %941 = vmatpush1.msra.mxu0 %v148
    %942 = vmatprep.subr.mxu0 %v147
    %943 = vmatpush1.msra.mxu0 %v146
    %944 = vmatprep.subr.mxu0 %v145
    %945 = vmatpush1.msra.mxu0 %v144
    %946 = vmatprep.subr.mxu0 %v143
    %947 = vmatpush1.msra.mxu0 %v142
    %948 = vmatprep.subr.mxu0 %v141
    %949 = vmatpush1.msra.mxu0 %v140
    %950 = vmatprep.subr.mxu0 %v139
    %951 = vmatpush1.msra.mxu0 %v138
    %952 = vmatprep.subr.mxu0 %v137
    %953 = vmatpush1.msra.mxu0 %v136
    %954 = vmatprep.subr.mxu0 %v135
    %955 = vmatpush1.msra.mxu0 %v134
    %956 = vmatprep.subr.mxu0 0.0
    %957 = vmatpush2.msra.mxu0 0.0
    %958 = vmatprep.subr.mxu0 0.0
    %959 = vmatpush2.msra.mxu0 0.0
    %960 = vmatprep.subr.mxu0 0.0
    %961 = vmatpush2.msra.mxu0 0.0
    %962 = vmatprep.subr.mxu0 0.0
    %963 = vmatpush2.msra.mxu0 0.0
    %964 = vmatprep.subr.mxu0 0.0
    %965 = vmatpush2.msra.mxu0 0.0
    %966 = vmatprep.subr.mxu0 0.0
    %967 = vmatpush2.msra.mxu0 0.0
    %968 = vmatprep.subr.mxu0 0.0
    %969 = vmatpush2.msra.mxu0 0.0
    %970 = vmatprep.subr.mxu0 0.0
    %971 = vmatpush2.msra.mxu0 0.0
    %972 = vmatprep.subr.mxu0 0.0
    %973 = vmatpush2.msra.mxu0 0.0
    %974 = vmatprep.subr.mxu0 0.0
    %975 = vmatpush2.msra.mxu0 0.0
    %976 = vmatprep.subr.mxu0 0.0
    %977 = vmatpush2.msra.mxu0 0.0
    %978 = vmatprep.subr.mxu0 0.0
    %979 = vmatpush2.msra.mxu0 0.0
    %980 = vmatprep.subr.mxu0 0.0
    %981 = vmatpush2.msra.mxu0 0.0
    %982 = vmatprep.subr.mxu0 0.0
    %983 = vmatpush2.msra.mxu0 0.0
    %984 = vmatprep.subr.mxu0 0.0
    %985 = vmatpush2.msra.mxu0 0.0
    %986 = vmatprep.subr.mxu0 0.0
    %987 = vmatpush2.msra.mxu0 0.0
    %988 = vmatprep.mubr.f32.mxu0 0.0
    %989 = vmatmul.mubr.f32.gmra.mxu0 %v922
    %v990 = vpop.f32.mrf.mxu0
    %v991 = vadd.f32 %v169, %v990
    %v992 = vpop.f32.mrf.mxu0
    %v993 = vadd.f32 %v173, %v992
    %994 = vdwg.mxu0
    %v995 = vrot.slane %v131, 4
    %v997 = vadd.f32 %v991, %v995
    %v998 = vtanh.pop %v997
    %v999 = vmul.f32 %v998, 0.5
    %v1000 = vadd.f32 %v999, 0.5
    %v1001 = vsel %vm155, %v998, %v1000
    %v1002 = vmul.f32 %v1001, %v884
    %1004 = vrot.lane.b32.xlu0 %v1001, 64
    %v1005 = vpop.permute.xlu0 %1004
    %v1007 = vmul.f32 %v1001, %v1005
    %1009 = vrot.lane.b32.xlu0 %v1007, 32
    %v1010 = vpop.permute.xlu0 %1009
    %v1012 = vadd.f32 %v1002, %v1010
    %v1013 = vtanh.pop %v1012
    %1015 = vrot.lane.b32.xlu0 %v1013, 64
    %v1016 = vpop.permute.xlu0 %1015
    %v1018 = vmul.f32 %v1001, %v1016
    %v1019 = vtanh.pop %v993
    %v1020 = vmul.f32 %v1019, 0.5
    %v1021 = vadd.f32 %v1020, 0.5
    %v1022 = vsel %vm155, %v1019, %v1021
    %v1023 = vmul.f32 %v1022, %v905
    %1025 = vrot.lane.b32.xlu0 %v1022, 64
    %v1026 = vpop.permute.xlu0 %1025
    %v1028 = vmul.f32 %v1022, %v1026
    %1030 = vrot.lane.b32.xlu0 %v1028, 32
    %v1031 = vpop.permute.xlu0 %1030
    %v1033 = vadd.f32 %v1023, %v1031
    %v1034 = vtanh.pop %v1033
    %1036 = vrot.lane.b32.xlu0 %v1034, 64
    %v1037 = vpop.permute.xlu0 %1036
    %v1039 = vmul.f32 %v1022, %v1037
    %1041 = vrot.lane.b32.xlu0 %v1018, 32
    %v1042 = vpop.permute.xlu0 %1041
    %1045 = vrot.lane.b32.xlu0 %v1039, 64
    %v1046 = vpop.permute.xlu0 %1045
    %v1048 = vsel %vm163, %v1042, %v1046
    %v1050 = vsel %vm176, %v1048, 0
    %1052 = vmatprep.subr.mxu0 0.0
    %1053 = vmatpush1.msra.mxu0 0.0
    %1054 = vmatprep.subr.mxu0 0.0
    %1055 = vmatpush1.msra.mxu0 0.0
    %1056 = vmatprep.subr.mxu0 0.0
    %1057 = vmatpush1.msra.mxu0 0.0
    %1058 = vmatprep.subr.mxu0 0.0
    %1059 = vmatpush1.msra.mxu0 0.0
    %1060 = vmatprep.subr.mxu0 0.0
    %1061 = vmatpush1.msra.mxu0 0.0
    %1062 = vmatprep.subr.mxu0 0.0
    %1063 = vmatpush1.msra.mxu0 0.0
    %1064 = vmatprep.subr.mxu0 0.0
    %1065 = vmatpush1.msra.mxu0 0.0
    %1066 = vmatprep.subr.mxu0 0.0
    %1067 = vmatpush1.msra.mxu0 0.0
    %1068 = vmatprep.subr.mxu0 %v149
    %1069 = vmatpush1.msra.mxu0 %v148
    %1070 = vmatprep.subr.mxu0 %v147
    %1071 = vmatpush1.msra.mxu0 %v146
    %1072 = vmatprep.subr.mxu0 %v145
    %1073 = vmatpush1.msra.mxu0 %v144
    %1074 = vmatprep.subr.mxu0 %v143
    %1075 = vmatpush1.msra.mxu0 %v142
    %1076 = vmatprep.subr.mxu0 %v141
    %1077 = vmatpush1.msra.mxu0 %v140
    %1078 = vmatprep.subr.mxu0 %v139
    %1079 = vmatpush1.msra.mxu0 %v138
    %1080 = vmatprep.subr.mxu0 %v137
    %1081 = vmatpush1.msra.mxu0 %v136
    %1082 = vmatprep.subr.mxu0 %v135
    %1083 = vmatpush1.msra.mxu0 %v134
    %1084 = vmatprep.subr.mxu0 0.0
    %1085 = vmatpush2.msra.mxu0 0.0
    %1086 = vmatprep.subr.mxu0 0.0
    %1087 = vmatpush2.msra.mxu0 0.0
    %1088 = vmatprep.subr.mxu0 0.0
    %1089 = vmatpush2.msra.mxu0 0.0
    %1090 = vmatprep.subr.mxu0 0.0
    %1091 = vmatpush2.msra.mxu0 0.0
    %1092 = vmatprep.subr.mxu0 0.0
    %1093 = vmatpush2.msra.mxu0 0.0
    %1094 = vmatprep.subr.mxu0 0.0
    %1095 = vmatpush2.msra.mxu0 0.0
    %1096 = vmatprep.subr.mxu0 0.0
    %1097 = vmatpush2.msra.mxu0 0.0
    %1098 = vmatprep.subr.mxu0 0.0
    %1099 = vmatpush2.msra.mxu0 0.0
    %1100 = vmatprep.subr.mxu0 0.0
    %1101 = vmatpush2.msra.mxu0 0.0
    %1102 = vmatprep.subr.mxu0 0.0
    %1103 = vmatpush2.msra.mxu0 0.0
    %1104 = vmatprep.subr.mxu0 0.0
    %1105 = vmatpush2.msra.mxu0 0.0
    %1106 = vmatprep.subr.mxu0 0.0
    %1107 = vmatpush2.msra.mxu0 0.0
    %1108 = vmatprep.subr.mxu0 0.0
    %1109 = vmatpush2.msra.mxu0 0.0
    %1110 = vmatprep.subr.mxu0 0.0
    %1111 = vmatpush2.msra.mxu0 0.0
    %1112 = vmatprep.subr.mxu0 0.0
    %1113 = vmatpush2.msra.mxu0 0.0
    %1114 = vmatprep.subr.mxu0 0.0
    %1115 = vmatpush2.msra.mxu0 0.0
    %1116 = vmatprep.mubr.f32.mxu0 0.0
    %1117 = vmatmul.mubr.f32.gmra.mxu0 %v1050
    %v1118 = vpop.f32.mrf.mxu0
    %v1119 = vadd.f32 %v169, %v1118
    %v1120 = vpop.f32.mrf.mxu0
    %v1121 = vadd.f32 %v173, %v1120
    %1122 = vdwg.mxu0
    %v1123 = vrot.slane %v131, 6
    %v1125 = vadd.f32 %v1119, %v1123
    %v1126 = vtanh.pop %v1125
    %v1127 = vmul.f32 %v1126, 0.5
    %v1128 = vadd.f32 %v1127, 0.5
    %v1129 = vsel %vm155, %v1126, %v1128
    %v1130 = vmul.f32 %v1129, %v1012
    %1132 = vrot.lane.b32.xlu0 %v1129, 64
    %v1133 = vpop.permute.xlu0 %1132
    %v1135 = vmul.f32 %v1129, %v1133
    %1137 = vrot.lane.b32.xlu0 %v1135, 32
    %v1138 = vpop.permute.xlu0 %1137
    %v1140 = vadd.f32 %v1130, %v1138
    %v1141 = vtanh.pop %v1140
    %1143 = vrot.lane.b32.xlu0 %v1141, 64
    %v1144 = vpop.permute.xlu0 %1143
    %v1146 = vmul.f32 %v1129, %v1144
    %v1147 = vtanh.pop %v1121
    %v1148 = vmul.f32 %v1147, 0.5
    %v1149 = vadd.f32 %v1148, 0.5
    %v1150 = vsel %vm155, %v1147, %v1149
    %v1151 = vmul.f32 %v1150, %v1033
    %1153 = vrot.lane.b32.xlu0 %v1150, 64
    %v1154 = vpop.permute.xlu0 %1153
    %v1156 = vmul.f32 %v1150, %v1154
    %1158 = vrot.lane.b32.xlu0 %v1156, 32
    %v1159 = vpop.permute.xlu0 %1158
    %v1161 = vadd.f32 %v1151, %v1159
    %v1162 = vtanh.pop %v1161
    %1164 = vrot.lane.b32.xlu0 %v1162, 64
    %v1165 = vpop.permute.xlu0 %1164
    %v1167 = vmul.f32 %v1150, %v1165
    %1169 = vrot.lane.b32.xlu0 %v1146, 32
    %v1170 = vpop.permute.xlu0 %1169
    %1173 = vrot.lane.b32.xlu0 %v1167, 64
    %v1174 = vpop.permute.xlu0 %1173
    %v1176 = vsel %vm163, %v1170, %v1174
    %v1178 = vsel %vm176, %v1176, 0
    %1180 = vmatprep.subr.mxu0 0.0
    %1181 = vmatpush1.msra.mxu0 0.0
    %1182 = vmatprep.subr.mxu0 0.0
    %1183 = vmatpush1.msra.mxu0 0.0
    %1184 = vmatprep.subr.mxu0 0.0
    %1185 = vmatpush1.msra.mxu0 0.0
    %1186 = vmatprep.subr.mxu0 0.0
    %1187 = vmatpush1.msra.mxu0 0.0
    %1188 = vmatprep.subr.mxu0 0.0
    %1189 = vmatpush1.msra.mxu0 0.0
    %1190 = vmatprep.subr.mxu0 0.0
    %1191 = vmatpush1.msra.mxu0 0.0
    %1192 = vmatprep.subr.mxu0 0.0
    %1193 = vmatpush1.msra.mxu0 0.0
    %1194 = vmatprep.subr.mxu0 0.0
    %1195 = vmatpush1.msra.mxu0 0.0
    %1196 = vmatprep.subr.mxu0 %v149
    %1197 = vmatpush1.msra.mxu0 %v148
    %1198 = vmatprep.subr.mxu0 %v147
    %1199 = vmatpush1.msra.mxu0 %v146
    %1200 = vmatprep.subr.mxu0 %v145
    %1201 = vmatpush1.msra.mxu0 %v144
    %1202 = vmatprep.subr.mxu0 %v143
    %1203 = vmatpush1.msra.mxu0 %v142
    %1204 = vmatprep.subr.mxu0 %v141
    %1205 = vmatpush1.msra.mxu0 %v140
    %1206 = vmatprep.subr.mxu0 %v139
    %1207 = vmatpush1.msra.mxu0 %v138
    %1208 = vmatprep.subr.mxu0 %v137
    %1209 = vmatpush1.msra.mxu0 %v136
    %1210 = vmatprep.subr.mxu0 %v135
    %1211 = vmatpush1.msra.mxu0 %v134
    %1212 = vmatprep.subr.mxu0 0.0
    %1213 = vmatpush2.msra.mxu0 0.0
    %1214 = vmatprep.subr.mxu0 0.0
    %1215 = vmatpush2.msra.mxu0 0.0
    %1216 = vmatprep.subr.mxu0 0.0
    %1217 = vmatpush2.msra.mxu0 0.0
    %1218 = vmatprep.subr.mxu0 0.0
    %1219 = vmatpush2.msra.mxu0 0.0
    %1220 = vmatprep.subr.mxu0 0.0
    %1221 = vmatpush2.msra.mxu0 0.0
    %1222 = vmatprep.subr.mxu0 0.0
    %1223 = vmatpush2.msra.mxu0 0.0
    %1224 = vmatprep.subr.mxu0 0.0
    %1225 = vmatpush2.msra.mxu0 0.0
    %1226 = vmatprep.subr.mxu0 0.0
    %1227 = vmatpush2.msra.mxu0 0.0
    %1228 = vmatprep.subr.mxu0 0.0
    %1229 = vmatpush2.msra.mxu0 0.0
    %1230 = vmatprep.subr.mxu0 0.0
    %1231 = vmatpush2.msra.mxu0 0.0
    %1232 = vmatprep.subr.mxu0 0.0
    %1233 = vmatpush2.msra.mxu0 0.0
    %1234 = vmatprep.subr.mxu0 0.0
    %1235 = vmatpush2.msra.mxu0 0.0
    %1236 = vmatprep.subr.mxu0 0.0
    %1237 = vmatpush2.msra.mxu0 0.0
    %1238 = vmatprep.subr.mxu0 0.0
    %1239 = vmatpush2.msra.mxu0 0.0
    %1240 = vmatprep.subr.mxu0 0.0
    %1241 = vmatpush2.msra.mxu0 0.0
    %1242 = vmatprep.subr.mxu0 0.0
    %1243 = vmatpush2.msra.mxu0 0.0
    %1244 = vmatprep.mubr.f32.mxu0 0.0
    %1245 = vmatmul.mubr.f32.gmra.mxu0 %v1178
    %v1246 = vpop.f32.mrf.mxu0
    %v1247 = vpop.f32.mrf.mxu0
    %v1248 = vadd.f32 %v173, %v1247
    %1249 = vdwg.mxu0
    %v1250 = vtanh.pop %v1248
    %v1251 = vmul.f32 %v1250, 0.5
    %v1252 = vadd.f32 %v1251, 0.5
    %v1253 = vsel %vm155, %v1250, %v1252
    %v1254 = vmul.f32 %v1253, %v1161
    %1256 = vrot.lane.b32.xlu0 %v1253, 64
    %v1257 = vpop.permute.xlu0 %1256
    %v1259 = vmul.f32 %v1253, %v1257
    %1261 = vrot.lane.b32.xlu0 %v1259, 32
    %v1262 = vpop.permute.xlu0 %1261
    %v1264 = vadd.f32 %v1254, %v1262
    %v1265 = vtanh.pop %v1264
    %1267 = vrot.lane.b32.xlu0 %v1265, 64
    %v1268 = vpop.permute.xlu0 %1267
    %v1270 = vmul.f32 %v1253, %v1268
    %vm1271 = vcmask 254976
    %1272 = vst.msk [vmem:[#allocation6] sm:$0x3] %vm1271, %v1170
    %1274 = vrot.lane.b32.xlu0 %v1270, 32
    %v1275 = vpop.permute.xlu0 %1274
    %s1277 = scalar_lea.vmem [#allocation6], 2
    %1278 = vst.msk [vmem:[%s1277] sm:$0x3] %vm1271, %v1275
    %v1279 = vld [vmem:[%s5] sm:$0x1]
    %v1281 = vlaneseq
    %v1282 = vshrl.u32 %v1281, 7
    %v1283 = vsub.s32 0, %v1282
    %v1284 = vrot.slane %v1279, %v1283
    %1285 = vrot.lane.b32.xlu0 %v1284, 96
    %v1286 = vpop.permute.xlu0 %1285
    %v1288 = vmul.f32 %v1270, %v1286
    %1290 = vrot.lane.b32.xlu0 %v1288, 32
    %v1291 = vpop.permute.xlu0 %1290
    %v1293 = vsel %vm1271, %v1291, 0.0
    %1294 = vadd.xlane.f32.xlu0 %v1293
    %v1295 = vpop.xlane.xlu0 %1294
    %v1296 = vld [vmem:[#allocation2] sm:$0x1]
    %v1298 = vlaneseq
    %v1299 = vshrl.u32 %v1298, 7
    %v1300 = vsub.s32 0, %v1299
    %v1301 = vrot.slane %v1296, %v1300
    %v1303 = vadd.f32 %v1295, %v1301
    %vm1304 = vcmask 1024
    %1305 = vst.msk [vmem:[%s7] sm:$0x3] %vm1304, %v1303
    // Predicated region
    $region34: #{net_forward.1} parent=1 // pred_check
      _
    $region35: #{net_forward.1} parent=1 // pred_check_branch
      %1307 = sbr.rel (0) target = $region37
    $region36: #{net_forward.1} parent=1 // pred_region
      _
    $region37: #{net_forward.1} parent=1 // pred_fallthru
      _
    // Predicated region
    $region38: #{net_forward.1} parent=1 // pred_check
      _
    $region39: #{net_forward.1} parent=1 // pred_check_branch
      %1309 = sbr.rel (0) target = $region41
    $region40: #{net_forward.1} parent=1 // pred_region
      %s1311 = ssub.s32 64, 64
      %1312 = vsyncadd [#allocation5], %s1311
      %s1313 = sshll.u32 [#allocation6], 4
      %s1314 = int_to_ptr.vmem [resolvable:$true] %s1313
      %1319 = dma.vmem_to_hbm [thread:$0]  %s1314, 64, %s8, [#allocation5], 32, 32, 2
    $region41: #{net_forward.1} parent=1 // pred_fallthru
      _
    // Predicated region
    $region42: #{net_forward.1} parent=1 // pred_check
      _
    $region43: #{net_forward.1} parent=1 // pred_check_branch
      %1321 = sbr.rel (0) target = $region45
    $region44: #{net_forward.1} parent=1 // pred_region
      _
    $region45: #{net_forward.1} parent=1 // pred_fallthru
      _
    // Predicated region
    $region46: #{net_forward.1} parent=1 // pred_check
      _
    $region47: #{net_forward.1} parent=1 // pred_check_branch
      %1323 = sbr.rel (0) target = $region49
    $region48: #{net_forward.1} parent=1 // pred_region
      %1324 = dma.done [#allocation5], 64
    $region49: #{net_forward.1} parent=1 // pred_fallthru
      _
    %1325 = vsyncpa [#allocation4], 1
    %1326 = vsyncpa [#allocation5], 1

</llo_original>
